<compile_context>
chip_gen: v6e
topology: v6e:2x2x1
jax: 0.10.0
libtpu: 0.0.40
codegen_flags: <defaults>
</compile_context>

<pallas_src>
import functools

import jax
import jax.numpy as jnp
from jax.experimental import pallas as pl
from jax.experimental.pallas import tpu as pltpu

# ----------------------------- config ---------------------------------------
VOCAB = 100
D = 32          # hidden size
H = 2           # attention heads
DH = D // H     # head dim
FFN = 64        # intermediate size
LAYERS = 2
MAX_POS = 16
B = 2           # batch
S = 8           # sequence length
LN_EPS = 1e-12


# ----------------------------- fused kernel ---------------------------------
def _layernorm(h, g, b):
    mean = jnp.mean(h, axis=-1, keepdims=True)
    var = jnp.mean((h - mean) ** 2, axis=-1, keepdims=True)
    return (h - mean) * jax.lax.rsqrt(var + LN_EPS) * g + b


def _bf16(x):
    return x.astype(jnp.bfloat16)


def _encoder_kernel(ids_ref, mask_ref, tok_emb_ref, pos_emb_ref,
                    emb_g_ref, emb_b_ref,
                    w_qkv_ref, b_qkv_ref, w_o_ref, b_o_ref,
                    w_f1_ref, b_f1_ref, w_f2_ref, b_f2_ref,
                    ln1_g_ref, ln1_b_ref, ln2_g_ref, ln2_b_ref,
                    hidden_ref, *, seq):
    # Each grid step handles one sequence:
    #   ids: (S, 1) int32, mask: (1, 1, S) additive, output block: (S, D).

    # ---- fused embedding lookup: one-hot @ tok_emb (MXU gather) -------------
    ids = ids_ref[...]                                              # (S, 1)
    vocab_iota = jax.lax.broadcasted_iota(jnp.int32, (seq, VOCAB), 1)
    onehot = (vocab_iota == ids).astype(jnp.float32)                # (S, VOCAB)
    tok = jnp.dot(onehot, tok_emb_ref[...],
                  preferred_element_type=jnp.float32)               # (S, D)
    x = tok + pos_emb_ref[0:seq, :]
    x = _layernorm(x, emb_g_ref[...], emb_b_ref[...])

    # Hoisted out of the layer/head loops.
    mask = mask_ref[0]                                              # (1, S)
    scale = 1.0 / jnp.sqrt(jnp.float32(DH))

    for l in range(LAYERS):
        # --- fused QKV projection (bf16 operands, f32 accumulation) ----------
        qkv = jnp.dot(_bf16(x), _bf16(w_qkv_ref[l]),
                      preferred_element_type=jnp.float32) + b_qkv_ref[l]

        # --- multi-head self-attention (static H=2 unroll, 2-D matmuls) ------
        ctx_heads = []
        for h in range(H):
            q_h = qkv[:, h * DH:(h + 1) * DH]                       # (S, DH)
            k_h = qkv[:, D + h * DH:D + (h + 1) * DH]
            v_h = qkv[:, 2 * D + h * DH:2 * D + (h + 1) * DH]
            # q @ k^T without materializing a transpose.
            s = jax.lax.dot_general(
                _bf16(q_h), _bf16(k_h), (((1,), (1,)), ((), ())),
                preferred_element_type=jnp.float32) * scale         # (S, S)
            s = s + mask
            s_max = jnp.max(s, axis=-1, keepdims=True)
            e = jnp.exp(s - s_max)
            denom = jnp.sum(e, axis=-1, keepdims=True)               # >= 1.0
            p = e * pl.reciprocal(denom, approx=True)                # EUP
            ctx_heads.append(jnp.dot(_bf16(p), _bf16(v_h),
                                     preferred_element_type=jnp.float32))
        ctx = jnp.concatenate(ctx_heads, axis=-1)                    # (S, D)

        # --- output projection + residual LayerNorm --------------------------
        attn = jnp.dot(_bf16(ctx), _bf16(w_o_ref[l]),
                       preferred_element_type=jnp.float32) + b_o_ref[l]
        x = _layernorm(attn + x, ln1_g_ref[l], ln1_b_ref[l])

        # --- feed-forward (tanh GELU -> EUP) + residual LayerNorm -------------
        ff = jnp.dot(_bf16(x), _bf16(w_f1_ref[l]),
                     preferred_element_type=jnp.float32) + b_f1_ref[l]
        ff = jax.nn.gelu(ff, approximate=True)   # tanh form (vs PyTorch erf)
        ff = jnp.dot(_bf16(ff), _bf16(w_f2_ref[l]),
                     preferred_element_type=jnp.float32) + b_f2_ref[l]
        x = _layernorm(ff + x, ln2_g_ref[l], ln2_b_ref[l])

    # Lane-dense full-hidden store; CLS slice happens in the wrapper.
    hidden_ref[...] = x.astype(hidden_ref.dtype)


def _const_spec(shape):
    nd = len(shape)
    return pl.BlockSpec(shape, lambda b, _nd=nd: (0,) * _nd)


# ----------------------------- model ----------------------------------------
def init_params(key):
    def dense(k, din, dout):
        return (0.02 * jax.random.normal(k, (din, dout), jnp.float32),
                jnp.zeros((dout,), jnp.float32))

    keys = jax.random.split(key, 2 + 6 * LAYERS)
    params = {
        "tok_emb": 0.02 * jax.random.normal(keys[0], (VOCAB, D), jnp.float32),
        "pos_emb": 0.02 * jax.random.normal(keys[1], (MAX_POS, D), jnp.float32),
        "emb_ln_g": jnp.ones((1, D), jnp.float32),
        "emb_ln_b": jnp.zeros((1, D), jnp.float32),
    }
    w_qkv, b_qkv, w_o, b_o = [], [], [], []
    w_f1, b_f1, w_f2, b_f2 = [], [], [], []
    for i in range(LAYERS):
        lk = keys[2 + 6 * i: 2 + 6 * (i + 1)]
        wq, bq = dense(lk[0], D, D)
        wk, bk = dense(lk[1], D, D)
        wv, bv = dense(lk[2], D, D)
        w_qkv.append(jnp.concatenate([wq, wk, wv], axis=1))   # (D, 3D)
        b_qkv.append(jnp.concatenate([bq, bk, bv])[None, :])  # (1, 3D)
        wo, bo = dense(lk[3], D, D)
        w_o.append(wo)
        b_o.append(bo[None, :])
        w1, b1 = dense(lk[4], D, FFN)
        w_f1.append(w1)
        b_f1.append(b1[None, :])
        w2, b2 = dense(lk[5], FFN, D)
        w_f2.append(w2)
        b_f2.append(b2[None, :])
    params.update({
        "w_qkv": jnp.stack(w_qkv), "b_qkv": jnp.stack(b_qkv),
        "w_o": jnp.stack(w_o), "b_o": jnp.stack(b_o),
        "w_f1": jnp.stack(w_f1), "b_f1": jnp.stack(b_f1),
        "w_f2": jnp.stack(w_f2), "b_f2": jnp.stack(b_f2),
        "ln1_g": jnp.ones((LAYERS, 1, D), jnp.float32),
        "ln1_b": jnp.zeros((LAYERS, 1, D), jnp.float32),
        "ln2_g": jnp.ones((LAYERS, 1, D), jnp.float32),
        "ln2_b": jnp.zeros((LAYERS, 1, D), jnp.float32),
    })
    return params


def wrapped_model_forward(params, input_ids, attention_mask=None):
    """Equivalent of WrappedModel.forward: last_hidden_state[:, 0, :]."""
    bsz, seq = input_ids.shape
    if attention_mask is None:
        attention_mask = jnp.ones((bsz, seq), jnp.float32)
    # HF-style additive mask: 0 for keep, -1e9 for masked keys.  (B, 1, S)
    add_mask = ((1.0 - attention_mask.astype(jnp.float32)) * -1e9
                ).reshape(bsz, 1, seq)
    ids = input_ids.astype(jnp.int32).reshape(bsz * seq, 1)

    weight_args = (
        params["tok_emb"], params["pos_emb"],
        params["emb_ln_g"], params["emb_ln_b"],
        params["w_qkv"], params["b_qkv"],
        params["w_o"], params["b_o"],
        params["w_f1"], params["b_f1"],
        params["w_f2"], params["b_f2"],
        params["ln1_g"], params["ln1_b"],
        params["ln2_g"], params["ln2_b"])

    in_specs = [
        pl.BlockSpec((seq, 1), lambda b: (b, 0)),        # ids (per-batch rows)
        pl.BlockSpec((1, 1, seq), lambda b: (b, 0, 0)),  # additive mask
    ] + [_const_spec(w.shape) for w in weight_args]      # weights: VMEM-resident

    hidden = pl.pallas_call(
        functools.partial(_encoder_kernel, seq=seq),
        out_shape=jax.ShapeDtypeStruct((bsz * seq, D), jnp.float32),
        grid=(bsz,),
        in_specs=in_specs,
        out_specs=pl.BlockSpec((seq, D), lambda b: (b, 0)),
        compiler_params=pltpu.CompilerParams(
            dimension_semantics=("parallel",)),          # 2 TCs on v7x
    )(ids, add_mask, *weight_args)

    # CLS pooling (row 0 of every sequence) — trivial slice in the wrapper so
    # the kernel's store stays lane-dense / unmasked.
    return hidden.reshape(bsz, seq, D)[:, 0, :]


# ----------------------------- main ------------------------------------------
if __name__ == "__main__":
    key = jax.random.PRNGKey(0)
    pkey, ikey = jax.random.split(key)

    params = init_params(pkey)
    input_ids = jax.random.randint(ikey, (B, S), 0, VOCAB, dtype=jnp.int32)
    attention_mask = jnp.ones((B, S), jnp.float32)
    # Mask out the last two tokens of the second sequence (padding).
    attention_mask = attention_mask.at[1, -2:].set(0.0)

    out = wrapped_model_forward(params, input_ids, attention_mask)
    out = jax.block_until_ready(out)
    assert out.shape == (B, D) and out.dtype == jnp.float32
    print("KERNEL_OK")
</pallas_src>

<mosaic_0001>
module attributes {stable_mosaic.version = 11 : i64} {
  func.func @_encoder_kernel(%arg0: i32, %arg1: memref<8x1xi32, #tpu.memory_space<vmem>>, %arg2: memref<1x1x8xf32, #tpu.memory_space<vmem>>, %arg3: memref<100x32xf32, #tpu.memory_space<vmem>>, %arg4: memref<16x32xf32, #tpu.memory_space<vmem>>, %arg5: memref<1x32xf32, #tpu.memory_space<vmem>>, %arg6: memref<1x32xf32, #tpu.memory_space<vmem>>, %arg7: memref<2x32x96xf32, #tpu.memory_space<vmem>>, %arg8: memref<2x1x96xf32, #tpu.memory_space<vmem>>, %arg9: memref<2x32x32xf32, #tpu.memory_space<vmem>>, %arg10: memref<2x1x32xf32, #tpu.memory_space<vmem>>, %arg11: memref<2x32x64xf32, #tpu.memory_space<vmem>>, %arg12: memref<2x1x64xf32, #tpu.memory_space<vmem>>, %arg13: memref<2x64x32xf32, #tpu.memory_space<vmem>>, %arg14: memref<2x1x32xf32, #tpu.memory_space<vmem>>, %arg15: memref<2x1x32xf32, #tpu.memory_space<vmem>>, %arg16: memref<2x1x32xf32, #tpu.memory_space<vmem>>, %arg17: memref<2x1x32xf32, #tpu.memory_space<vmem>>, %arg18: memref<2x1x32xf32, #tpu.memory_space<vmem>>, %arg19: memref<8x32xf32, #tpu.memory_space<vmem>>) attributes {dimension_semantics = [#tpu.dimension_semantics<parallel>], iteration_bounds = array<i64: 2>, scalar_prefetch = 0 : i64, scratch_operands = 0 : i64, tpu.core_type = #tpu.core_type<tc>, window_params = [{transform_indices = @transform_0, window_bounds = array<i64: 8, 1>}, {transform_indices = @transform_1, window_bounds = array<i64: 1, 1, 8>}, {pipeline_mode = #tpu.pipeline_mode<synchronous>, transform_indices = @transform_2, window_bounds = array<i64: 100, 32>}, {pipeline_mode = #tpu.pipeline_mode<synchronous>, transform_indices = @transform_3, window_bounds = array<i64: 16, 32>}, {pipeline_mode = #tpu.pipeline_mode<synchronous>, transform_indices = @transform_4, window_bounds = array<i64: 1, 32>}, {pipeline_mode = #tpu.pipeline_mode<synchronous>, transform_indices = @transform_5, window_bounds = array<i64: 1, 32>}, {pipeline_mode = #tpu.pipeline_mode<synchronous>, transform_indices = @transform_6, window_bounds = array<i64: 2, 32, 96>}, {pipeline_mode = #tpu.pipeline_mode<synchronous>, transform_indices = @transform_7, window_bounds = array<i64: 2, 1, 96>}, {pipeline_mode = #tpu.pipeline_mode<synchronous>, transform_indices = @transform_8, window_bounds = array<i64: 2, 32, 32>}, {pipeline_mode = #tpu.pipeline_mode<synchronous>, transform_indices = @transform_9, window_bounds = array<i64: 2, 1, 32>}, {pipeline_mode = #tpu.pipeline_mode<synchronous>, transform_indices = @transform_10, window_bounds = array<i64: 2, 32, 64>}, {pipeline_mode = #tpu.pipeline_mode<synchronous>, transform_indices = @transform_11, window_bounds = array<i64: 2, 1, 64>}, {pipeline_mode = #tpu.pipeline_mode<synchronous>, transform_indices = @transform_12, window_bounds = array<i64: 2, 64, 32>}, {pipeline_mode = #tpu.pipeline_mode<synchronous>, transform_indices = @transform_13, window_bounds = array<i64: 2, 1, 32>}, {pipeline_mode = #tpu.pipeline_mode<synchronous>, transform_indices = @transform_14, window_bounds = array<i64: 2, 1, 32>}, {pipeline_mode = #tpu.pipeline_mode<synchronous>, transform_indices = @transform_15, window_bounds = array<i64: 2, 1, 32>}, {pipeline_mode = #tpu.pipeline_mode<synchronous>, transform_indices = @transform_16, window_bounds = array<i64: 2, 1, 32>}, {pipeline_mode = #tpu.pipeline_mode<synchronous>, transform_indices = @transform_17, window_bounds = array<i64: 2, 1, 32>}, {transform_indices = @transform_18, window_bounds = array<i64: 8, 32>}]} {
    %c0 = arith.constant 0 : index
    %c0_0 = arith.constant 0 : index
    %0 = vector.load %arg1[%c0, %c0_0] : memref<8x1xi32, #tpu.memory_space<vmem>>, vector<8x1xi32>
    %1 = tpu.iota {dimensions = array<i32: 1>} : vector<8x100xi32>
    %2 = vector.broadcast %0 : vector<8x1xi32> to vector<8x100xi32>
    %3 = arith.cmpi eq, %1, %2 : vector<8x100xi32>
    %4 = arith.extui %3 : vector<8x100xi1> to vector<8x100xi32>
    %5 = arith.sitofp %4 : vector<8x100xi32> to vector<8x100xf32>
    %c0_1 = arith.constant 0 : index
    %c0_2 = arith.constant 0 : index
    %6 = vector.load %arg3[%c0_1, %c0_2] : memref<100x32xf32, #tpu.memory_space<vmem>>, vector<100x32xf32>
    %cst = arith.constant dense<0.000000e+00> : vector<8x32xf32>
    %7 = tpu.matmul %5, %6, %cst {dimension_numbers = #tpu.dot_dimension_numbers<[1], [0], [0], [1], [0, 0, 1, 1], [], []>} : vector<8x100xf32>, vector<100x32xf32>, vector<8x32xf32> -> vector<8x32xf32>
    %c0_3 = arith.constant 0 : index
    %c0_4 = arith.constant 0 : index
    %8 = vector.load %arg4[%c0_3, %c0_4] : memref<16x32xf32, #tpu.memory_space<vmem>>, vector<8x32xf32>
    %9 = arith.addf %7, %8 : vector<8x32xf32>
    %c0_5 = arith.constant 0 : index
    %c0_6 = arith.constant 0 : index
    %10 = vector.load %arg5[%c0_5, %c0_6] : memref<1x32xf32, #tpu.memory_space<vmem>>, vector<1x32xf32>
    %c0_7 = arith.constant 0 : index
    %c0_8 = arith.constant 0 : index
    %11 = vector.load %arg6[%c0_7, %c0_8] : memref<1x32xf32, #tpu.memory_space<vmem>>, vector<1x32xf32>
    %cst_9 = arith.constant dense<0.000000e+00> : vector<8xf32>
    %12 = vector.multi_reduction <add>, %9, %cst_9 [1] : vector<8x32xf32> to vector<8xf32>
    %13 = vector.shape_cast %12 : vector<8xf32> to vector<8x1xf32>
    %cst_10 = arith.constant 3.200000e+01 : f32
    %14 = vector.broadcast %cst_10 : f32 to vector<8x1xf32>
    %15 = arith.divf %13, %14 : vector<8x1xf32>
    %16 = vector.broadcast %15 : vector<8x1xf32> to vector<8x32xf32>
    %17 = arith.subf %9, %16 : vector<8x32xf32>
    %18 = arith.mulf %17, %17 : vector<8x32xf32>
    %cst_11 = arith.constant dense<0.000000e+00> : vector<8xf32>
    %19 = vector.multi_reduction <add>, %18, %cst_11 [1] : vector<8x32xf32> to vector<8xf32>
    %20 = vector.shape_cast %19 : vector<8xf32> to vector<8x1xf32>
    %cst_12 = arith.constant 3.200000e+01 : f32
    %21 = vector.broadcast %cst_12 : f32 to vector<8x1xf32>
    %22 = arith.divf %20, %21 : vector<8x1xf32>
    %23 = vector.broadcast %15 : vector<8x1xf32> to vector<8x32xf32>
    %24 = arith.subf %9, %23 : vector<8x32xf32>
    %cst_13 = arith.constant 9.99999996E-13 : f32
    %25 = vector.broadcast %cst_13 : f32 to vector<8x1xf32>
    %26 = arith.addf %22, %25 : vector<8x1xf32>
    %27 = math.rsqrt %26 : vector<8x1xf32>
    %28 = vector.broadcast %27 : vector<8x1xf32> to vector<8x32xf32>
    %29 = arith.mulf %24, %28 : vector<8x32xf32>
    %30 = vector.broadcast %10 : vector<1x32xf32> to vector<8x32xf32>
    %31 = arith.mulf %29, %30 : vector<8x32xf32>
    %32 = vector.broadcast %11 : vector<1x32xf32> to vector<8x32xf32>
    %33 = arith.addf %31, %32 : vector<8x32xf32>
    %c0_14 = arith.constant 0 : index
    %c0_15 = arith.constant 0 : index
    %c0_16 = arith.constant 0 : index
    %34 = vector.load %arg2[%c0_14, %c0_15, %c0_16] : memref<1x1x8xf32, #tpu.memory_space<vmem>>, vector<1x1x8xf32>
    %35 = vector.shape_cast %34 : vector<1x1x8xf32> to vector<1x8xf32>
    %cst_17 = arith.constant 1.600000e+01 : f32
    %36 = math.sqrt %cst_17 : f32
    %cst_18 = arith.constant 1.000000e+00 : f32
    %37 = arith.divf %cst_18, %36 : f32
    %38 = arith.truncf %33 : vector<8x32xf32> to vector<8x32xbf16>
    %c0_19 = arith.constant 0 : index
    %c0_20 = arith.constant 0 : index
    %c0_21 = arith.constant 0 : index
    %39 = vector.load %arg7[%c0_19, %c0_20, %c0_21] : memref<2x32x96xf32, #tpu.memory_space<vmem>>, vector<1x32x96xf32>
    %40 = vector.shape_cast %39 : vector<1x32x96xf32> to vector<32x96xf32>
    %41 = arith.truncf %40 : vector<32x96xf32> to vector<32x96xbf16>
    %cst_22 = arith.constant dense<0.000000e+00> : vector<8x96xf32>
    %42 = tpu.matmul %38, %41, %cst_22 {dimension_numbers = #tpu.dot_dimension_numbers<[1], [0], [0], [1], [0, 0, 1, 1], [], []>} : vector<8x32xbf16>, vector<32x96xbf16>, vector<8x96xf32> -> vector<8x96xf32>
    %c0_23 = arith.constant 0 : index
    %c0_24 = arith.constant 0 : index
    %c0_25 = arith.constant 0 : index
    %43 = vector.load %arg8[%c0_23, %c0_24, %c0_25] : memref<2x1x96xf32, #tpu.memory_space<vmem>>, vector<1x1x96xf32>
    %44 = vector.shape_cast %43 : vector<1x1x96xf32> to vector<1x96xf32>
    %45 = vector.broadcast %44 : vector<1x96xf32> to vector<8x96xf32>
    %46 = arith.addf %42, %45 : vector<8x96xf32>
    %47 = vector.extract_strided_slice %46 {offsets = [0, 0], sizes = [8, 16], strides = [1, 1]} : vector<8x96xf32> to vector<8x16xf32>
    %48 = vector.extract_strided_slice %46 {offsets = [0, 32], sizes = [8, 16], strides = [1, 1]} : vector<8x96xf32> to vector<8x16xf32>
    %49 = vector.extract_strided_slice %46 {offsets = [0, 64], sizes = [8, 16], strides = [1, 1]} : vector<8x96xf32> to vector<8x16xf32>
    %50 = arith.truncf %47 : vector<8x16xf32> to vector<8x16xbf16>
    %51 = arith.truncf %48 : vector<8x16xf32> to vector<8x16xbf16>
    %cst_26 = arith.constant dense<0.000000e+00> : vector<8x8xf32>
    %52 = tpu.matmul %50, %51, %cst_26 {dimension_numbers = #tpu.dot_dimension_numbers<[1], [1], [0], [0], [0, 0, 1, 0], [], []>} : vector<8x16xbf16>, vector<8x16xbf16>, vector<8x8xf32> -> vector<8x8xf32>
    %53 = vector.broadcast %37 : f32 to vector<8x8xf32>
    %54 = arith.mulf %52, %53 : vector<8x8xf32>
    %55 = vector.broadcast %35 : vector<1x8xf32> to vector<8x8xf32>
    %56 = arith.addf %54, %55 : vector<8x8xf32>
    %cst_27 = arith.constant dense<0xFF800000> : vector<8xf32>
    %57 = vector.multi_reduction <maximumf>, %56, %cst_27 [1] : vector<8x8xf32> to vector<8xf32>
    %58 = vector.shape_cast %57 : vector<8xf32> to vector<8x1xf32>
    %59 = vector.broadcast %58 : vector<8x1xf32> to vector<8x8xf32>
    %60 = arith.subf %56, %59 : vector<8x8xf32>
    %61 = math.exp %60 : vector<8x8xf32>
    %cst_28 = arith.constant dense<0.000000e+00> : vector<8xf32>
    %62 = vector.multi_reduction <add>, %61, %cst_28 [1] : vector<8x8xf32> to vector<8xf32>
    %63 = vector.shape_cast %62 : vector<8xf32> to vector<8x1xf32>
    %64 = tpu.reciprocal %63 {approx = true} : vector<8x1xf32> -> vector<8x1xf32>
    %65 = vector.broadcast %64 : vector<8x1xf32> to vector<8x8xf32>
    %66 = arith.mulf %61, %65 : vector<8x8xf32>
    %67 = arith.truncf %66 : vector<8x8xf32> to vector<8x8xbf16>
    %68 = arith.truncf %49 : vector<8x16xf32> to vector<8x16xbf16>
    %cst_29 = arith.constant dense<0.000000e+00> : vector<8x16xf32>
    %69 = tpu.matmul %67, %68, %cst_29 {dimension_numbers = #tpu.dot_dimension_numbers<[1], [0], [0], [1], [0, 0, 1, 1], [], []>} : vector<8x8xbf16>, vector<8x16xbf16>, vector<8x16xf32> -> vector<8x16xf32>
    %70 = vector.extract_strided_slice %46 {offsets = [0, 16], sizes = [8, 16], strides = [1, 1]} : vector<8x96xf32> to vector<8x16xf32>
    %71 = vector.extract_strided_slice %46 {offsets = [0, 48], sizes = [8, 16], strides = [1, 1]} : vector<8x96xf32> to vector<8x16xf32>
    %72 = vector.extract_strided_slice %46 {offsets = [0, 80], sizes = [8, 16], strides = [1, 1]} : vector<8x96xf32> to vector<8x16xf32>
    %73 = arith.truncf %70 : vector<8x16xf32> to vector<8x16xbf16>
    %74 = arith.truncf %71 : vector<8x16xf32> to vector<8x16xbf16>
    %cst_30 = arith.constant dense<0.000000e+00> : vector<8x8xf32>
    %75 = tpu.matmul %73, %74, %cst_30 {dimension_numbers = #tpu.dot_dimension_numbers<[1], [1], [0], [0], [0, 0, 1, 0], [], []>} : vector<8x16xbf16>, vector<8x16xbf16>, vector<8x8xf32> -> vector<8x8xf32>
    %76 = vector.broadcast %37 : f32 to vector<8x8xf32>
    %77 = arith.mulf %75, %76 : vector<8x8xf32>
    %78 = vector.broadcast %35 : vector<1x8xf32> to vector<8x8xf32>
    %79 = arith.addf %77, %78 : vector<8x8xf32>
    %cst_31 = arith.constant dense<0xFF800000> : vector<8xf32>
    %80 = vector.multi_reduction <maximumf>, %79, %cst_31 [1] : vector<8x8xf32> to vector<8xf32>
    %81 = vector.shape_cast %80 : vector<8xf32> to vector<8x1xf32>
    %82 = vector.broadcast %81 : vector<8x1xf32> to vector<8x8xf32>
    %83 = arith.subf %79, %82 : vector<8x8xf32>
    %84 = math.exp %83 : vector<8x8xf32>
    %cst_32 = arith.constant dense<0.000000e+00> : vector<8xf32>
    %85 = vector.multi_reduction <add>, %84, %cst_32 [1] : vector<8x8xf32> to vector<8xf32>
    %86 = vector.shape_cast %85 : vector<8xf32> to vector<8x1xf32>
    %87 = tpu.reciprocal %86 {approx = true} : vector<8x1xf32> -> vector<8x1xf32>
    %88 = vector.broadcast %87 : vector<8x1xf32> to vector<8x8xf32>
    %89 = arith.mulf %84, %88 : vector<8x8xf32>
    %90 = arith.truncf %89 : vector<8x8xf32> to vector<8x8xbf16>
    %91 = arith.truncf %72 : vector<8x16xf32> to vector<8x16xbf16>
    %cst_33 = arith.constant dense<0.000000e+00> : vector<8x16xf32>
    %92 = tpu.matmul %90, %91, %cst_33 {dimension_numbers = #tpu.dot_dimension_numbers<[1], [0], [0], [1], [0, 0, 1, 1], [], []>} : vector<8x8xbf16>, vector<8x16xbf16>, vector<8x16xf32> -> vector<8x16xf32>
    %93 = tpu.concatenate %69, %92 in 1 : vector<8x16xf32>, vector<8x16xf32> -> vector<8x32xf32>
    %94 = arith.truncf %93 : vector<8x32xf32> to vector<8x32xbf16>
    %c0_34 = arith.constant 0 : index
    %c0_35 = arith.constant 0 : index
    %c0_36 = arith.constant 0 : index
    %95 = vector.load %arg9[%c0_34, %c0_35, %c0_36] : memref<2x32x32xf32, #tpu.memory_space<vmem>>, vector<1x32x32xf32>
    %96 = vector.shape_cast %95 : vector<1x32x32xf32> to vector<32x32xf32>
    %97 = arith.truncf %96 : vector<32x32xf32> to vector<32x32xbf16>
    %cst_37 = arith.constant dense<0.000000e+00> : vector<8x32xf32>
    %98 = tpu.matmul %94, %97, %cst_37 {dimension_numbers = #tpu.dot_dimension_numbers<[1], [0], [0], [1], [0, 0, 1, 1], [], []>} : vector<8x32xbf16>, vector<32x32xbf16>, vector<8x32xf32> -> vector<8x32xf32>
    %c0_38 = arith.constant 0 : index
    %c0_39 = arith.constant 0 : index
    %c0_40 = arith.constant 0 : index
    %99 = vector.load %arg10[%c0_38, %c0_39, %c0_40] : memref<2x1x32xf32, #tpu.memory_space<vmem>>, vector<1x1x32xf32>
    %100 = vector.shape_cast %99 : vector<1x1x32xf32> to vector<1x32xf32>
    %101 = vector.broadcast %100 : vector<1x32xf32> to vector<8x32xf32>
    %102 = arith.addf %98, %101 : vector<8x32xf32>
    %103 = arith.addf %102, %33 : vector<8x32xf32>
    %c0_41 = arith.constant 0 : index
    %c0_42 = arith.constant 0 : index
    %c0_43 = arith.constant 0 : index
    %104 = vector.load %arg15[%c0_41, %c0_42, %c0_43] : memref<2x1x32xf32, #tpu.memory_space<vmem>>, vector<1x1x32xf32>
    %105 = vector.shape_cast %104 : vector<1x1x32xf32> to vector<1x32xf32>
    %c0_44 = arith.constant 0 : index
    %c0_45 = arith.constant 0 : index
    %c0_46 = arith.constant 0 : index
    %106 = vector.load %arg16[%c0_44, %c0_45, %c0_46] : memref<2x1x32xf32, #tpu.memory_space<vmem>>, vector<1x1x32xf32>
    %107 = vector.shape_cast %106 : vector<1x1x32xf32> to vector<1x32xf32>
    %cst_47 = arith.constant dense<0.000000e+00> : vector<8xf32>
    %108 = vector.multi_reduction <add>, %103, %cst_47 [1] : vector<8x32xf32> to vector<8xf32>
    %109 = vector.shape_cast %108 : vector<8xf32> to vector<8x1xf32>
    %cst_48 = arith.constant 3.200000e+01 : f32
    %110 = vector.broadcast %cst_48 : f32 to vector<8x1xf32>
    %111 = arith.divf %109, %110 : vector<8x1xf32>
    %112 = vector.broadcast %111 : vector<8x1xf32> to vector<8x32xf32>
    %113 = arith.subf %103, %112 : vector<8x32xf32>
    %114 = arith.mulf %113, %113 : vector<8x32xf32>
    %cst_49 = arith.constant dense<0.000000e+00> : vector<8xf32>
    %115 = vector.multi_reduction <add>, %114, %cst_49 [1] : vector<8x32xf32> to vector<8xf32>
    %116 = vector.shape_cast %115 : vector<8xf32> to vector<8x1xf32>
    %cst_50 = arith.constant 3.200000e+01 : f32
    %117 = vector.broadcast %cst_50 : f32 to vector<8x1xf32>
    %118 = arith.divf %116, %117 : vector<8x1xf32>
    %119 = vector.broadcast %111 : vector<8x1xf32> to vector<8x32xf32>
    %120 = arith.subf %103, %119 : vector<8x32xf32>
    %cst_51 = arith.constant 9.99999996E-13 : f32
    %121 = vector.broadcast %cst_51 : f32 to vector<8x1xf32>
    %122 = arith.addf %118, %121 : vector<8x1xf32>
    %123 = math.rsqrt %122 : vector<8x1xf32>
    %124 = vector.broadcast %123 : vector<8x1xf32> to vector<8x32xf32>
    %125 = arith.mulf %120, %124 : vector<8x32xf32>
    %126 = vector.broadcast %105 : vector<1x32xf32> to vector<8x32xf32>
    %127 = arith.mulf %125, %126 : vector<8x32xf32>
    %128 = vector.broadcast %107 : vector<1x32xf32> to vector<8x32xf32>
    %129 = arith.addf %127, %128 : vector<8x32xf32>
    %130 = arith.truncf %129 : vector<8x32xf32> to vector<8x32xbf16>
    %c0_52 = arith.constant 0 : index
    %c0_53 = arith.constant 0 : index
    %c0_54 = arith.constant 0 : index
    %131 = vector.load %arg11[%c0_52, %c0_53, %c0_54] : memref<2x32x64xf32, #tpu.memory_space<vmem>>, vector<1x32x64xf32>
    %132 = vector.shape_cast %131 : vector<1x32x64xf32> to vector<32x64xf32>
    %133 = arith.truncf %132 : vector<32x64xf32> to vector<32x64xbf16>
    %cst_55 = arith.constant dense<0.000000e+00> : vector<8x64xf32>
    %134 = tpu.matmul %130, %133, %cst_55 {dimension_numbers = #tpu.dot_dimension_numbers<[1], [0], [0], [1], [0, 0, 1, 1], [], []>} : vector<8x32xbf16>, vector<32x64xbf16>, vector<8x64xf32> -> vector<8x64xf32>
    %c0_56 = arith.constant 0 : index
    %c0_57 = arith.constant 0 : index
    %c0_58 = arith.constant 0 : index
    %135 = vector.load %arg12[%c0_56, %c0_57, %c0_58] : memref<2x1x64xf32, #tpu.memory_space<vmem>>, vector<1x1x64xf32>
    %136 = vector.shape_cast %135 : vector<1x1x64xf32> to vector<1x64xf32>
    %137 = vector.broadcast %136 : vector<1x64xf32> to vector<8x64xf32>
    %138 = arith.addf %134, %137 : vector<8x64xf32>
    %139 = arith.mulf %138, %138 : vector<8x64xf32>
    %140 = arith.mulf %138, %139 : vector<8x64xf32>
    %cst_59 = arith.constant 4.471500e-02 : f32
    %141 = vector.broadcast %cst_59 : f32 to vector<8x64xf32>
    %142 = arith.mulf %141, %140 : vector<8x64xf32>
    %143 = arith.addf %138, %142 : vector<8x64xf32>
    %cst_60 = arith.constant 0.797884583 : f32
    %144 = vector.broadcast %cst_60 : f32 to vector<8x64xf32>
    %145 = arith.mulf %144, %143 : vector<8x64xf32>
    %146 = math.tanh %145 : vector<8x64xf32>
    %cst_61 = arith.constant 1.000000e+00 : f32
    %147 = vector.broadcast %cst_61 : f32 to vector<8x64xf32>
    %148 = arith.addf %147, %146 : vector<8x64xf32>
    %cst_62 = arith.constant 5.000000e-01 : f32
    %149 = vector.broadcast %cst_62 : f32 to vector<8x64xf32>
    %150 = arith.mulf %149, %148 : vector<8x64xf32>
    %151 = arith.mulf %138, %150 : vector<8x64xf32>
    %152 = arith.truncf %151 : vector<8x64xf32> to vector<8x64xbf16>
    %c0_63 = arith.constant 0 : index
    %c0_64 = arith.constant 0 : index
    %c0_65 = arith.constant 0 : index
    %153 = vector.load %arg13[%c0_63, %c0_64, %c0_65] : memref<2x64x32xf32, #tpu.memory_space<vmem>>, vector<1x64x32xf32>
    %154 = vector.shape_cast %153 : vector<1x64x32xf32> to vector<64x32xf32>
    %155 = arith.truncf %154 : vector<64x32xf32> to vector<64x32xbf16>
    %cst_66 = arith.constant dense<0.000000e+00> : vector<8x32xf32>
    %156 = tpu.matmul %152, %155, %cst_66 {dimension_numbers = #tpu.dot_dimension_numbers<[1], [0], [0], [1], [0, 0, 1, 1], [], []>} : vector<8x64xbf16>, vector<64x32xbf16>, vector<8x32xf32> -> vector<8x32xf32>
    %c0_67 = arith.constant 0 : index
    %c0_68 = arith.constant 0 : index
    %c0_69 = arith.constant 0 : index
    %157 = vector.load %arg14[%c0_67, %c0_68, %c0_69] : memref<2x1x32xf32, #tpu.memory_space<vmem>>, vector<1x1x32xf32>
    %158 = vector.shape_cast %157 : vector<1x1x32xf32> to vector<1x32xf32>
    %159 = vector.broadcast %158 : vector<1x32xf32> to vector<8x32xf32>
    %160 = arith.addf %156, %159 : vector<8x32xf32>
    %161 = arith.addf %160, %129 : vector<8x32xf32>
    %c0_70 = arith.constant 0 : index
    %c0_71 = arith.constant 0 : index
    %c0_72 = arith.constant 0 : index
    %162 = vector.load %arg17[%c0_70, %c0_71, %c0_72] : memref<2x1x32xf32, #tpu.memory_space<vmem>>, vector<1x1x32xf32>
    %163 = vector.shape_cast %162 : vector<1x1x32xf32> to vector<1x32xf32>
    %c0_73 = arith.constant 0 : index
    %c0_74 = arith.constant 0 : index
    %c0_75 = arith.constant 0 : index
    %164 = vector.load %arg18[%c0_73, %c0_74, %c0_75] : memref<2x1x32xf32, #tpu.memory_space<vmem>>, vector<1x1x32xf32>
    %165 = vector.shape_cast %164 : vector<1x1x32xf32> to vector<1x32xf32>
    %cst_76 = arith.constant dense<0.000000e+00> : vector<8xf32>
    %166 = vector.multi_reduction <add>, %161, %cst_76 [1] : vector<8x32xf32> to vector<8xf32>
    %167 = vector.shape_cast %166 : vector<8xf32> to vector<8x1xf32>
    %cst_77 = arith.constant 3.200000e+01 : f32
    %168 = vector.broadcast %cst_77 : f32 to vector<8x1xf32>
    %169 = arith.divf %167, %168 : vector<8x1xf32>
    %170 = vector.broadcast %169 : vector<8x1xf32> to vector<8x32xf32>
    %171 = arith.subf %161, %170 : vector<8x32xf32>
    %172 = arith.mulf %171, %171 : vector<8x32xf32>
    %cst_78 = arith.constant dense<0.000000e+00> : vector<8xf32>
    %173 = vector.multi_reduction <add>, %172, %cst_78 [1] : vector<8x32xf32> to vector<8xf32>
    %174 = vector.shape_cast %173 : vector<8xf32> to vector<8x1xf32>
    %cst_79 = arith.constant 3.200000e+01 : f32
    %175 = vector.broadcast %cst_79 : f32 to vector<8x1xf32>
    %176 = arith.divf %174, %175 : vector<8x1xf32>
    %177 = vector.broadcast %169 : vector<8x1xf32> to vector<8x32xf32>
    %178 = arith.subf %161, %177 : vector<8x32xf32>
    %cst_80 = arith.constant 9.99999996E-13 : f32
    %179 = vector.broadcast %cst_80 : f32 to vector<8x1xf32>
    %180 = arith.addf %176, %179 : vector<8x1xf32>
    %181 = math.rsqrt %180 : vector<8x1xf32>
    %182 = vector.broadcast %181 : vector<8x1xf32> to vector<8x32xf32>
    %183 = arith.mulf %178, %182 : vector<8x32xf32>
    %184 = vector.broadcast %163 : vector<1x32xf32> to vector<8x32xf32>
    %185 = arith.mulf %183, %184 : vector<8x32xf32>
    %186 = vector.broadcast %165 : vector<1x32xf32> to vector<8x32xf32>
    %187 = arith.addf %185, %186 : vector<8x32xf32>
    %188 = arith.truncf %187 : vector<8x32xf32> to vector<8x32xbf16>
    %c1 = arith.constant 1 : index
    %c0_81 = arith.constant 0 : index
    %c0_82 = arith.constant 0 : index
    %189 = vector.load %arg7[%c1, %c0_81, %c0_82] : memref<2x32x96xf32, #tpu.memory_space<vmem>>, vector<1x32x96xf32>
    %190 = vector.shape_cast %189 : vector<1x32x96xf32> to vector<32x96xf32>
    %191 = arith.truncf %190 : vector<32x96xf32> to vector<32x96xbf16>
    %cst_83 = arith.constant dense<0.000000e+00> : vector<8x96xf32>
    %192 = tpu.matmul %188, %191, %cst_83 {dimension_numbers = #tpu.dot_dimension_numbers<[1], [0], [0], [1], [0, 0, 1, 1], [], []>} : vector<8x32xbf16>, vector<32x96xbf16>, vector<8x96xf32> -> vector<8x96xf32>
    %c1_84 = arith.constant 1 : index
    %c0_85 = arith.constant 0 : index
    %c0_86 = arith.constant 0 : index
    %193 = vector.load %arg8[%c1_84, %c0_85, %c0_86] : memref<2x1x96xf32, #tpu.memory_space<vmem>>, vector<1x1x96xf32>
    %194 = vector.shape_cast %193 : vector<1x1x96xf32> to vector<1x96xf32>
    %195 = vector.broadcast %194 : vector<1x96xf32> to vector<8x96xf32>
    %196 = arith.addf %192, %195 : vector<8x96xf32>
    %197 = vector.extract_strided_slice %196 {offsets = [0, 0], sizes = [8, 16], strides = [1, 1]} : vector<8x96xf32> to vector<8x16xf32>
    %198 = vector.extract_strided_slice %196 {offsets = [0, 32], sizes = [8, 16], strides = [1, 1]} : vector<8x96xf32> to vector<8x16xf32>
    %199 = vector.extract_strided_slice %196 {offsets = [0, 64], sizes = [8, 16], strides = [1, 1]} : vector<8x96xf32> to vector<8x16xf32>
    %200 = arith.truncf %197 : vector<8x16xf32> to vector<8x16xbf16>
    %201 = arith.truncf %198 : vector<8x16xf32> to vector<8x16xbf16>
    %cst_87 = arith.constant dense<0.000000e+00> : vector<8x8xf32>
    %202 = tpu.matmul %200, %201, %cst_87 {dimension_numbers = #tpu.dot_dimension_numbers<[1], [1], [0], [0], [0, 0, 1, 0], [], []>} : vector<8x16xbf16>, vector<8x16xbf16>, vector<8x8xf32> -> vector<8x8xf32>
    %203 = vector.broadcast %37 : f32 to vector<8x8xf32>
    %204 = arith.mulf %202, %203 : vector<8x8xf32>
    %205 = vector.broadcast %35 : vector<1x8xf32> to vector<8x8xf32>
    %206 = arith.addf %204, %205 : vector<8x8xf32>
    %cst_88 = arith.constant dense<0xFF800000> : vector<8xf32>
    %207 = vector.multi_reduction <maximumf>, %206, %cst_88 [1] : vector<8x8xf32> to vector<8xf32>
    %208 = vector.shape_cast %207 : vector<8xf32> to vector<8x1xf32>
    %209 = vector.broadcast %208 : vector<8x1xf32> to vector<8x8xf32>
    %210 = arith.subf %206, %209 : vector<8x8xf32>
    %211 = math.exp %210 : vector<8x8xf32>
    %cst_89 = arith.constant dense<0.000000e+00> : vector<8xf32>
    %212 = vector.multi_reduction <add>, %211, %cst_89 [1] : vector<8x8xf32> to vector<8xf32>
    %213 = vector.shape_cast %212 : vector<8xf32> to vector<8x1xf32>
    %214 = tpu.reciprocal %213 {approx = true} : vector<8x1xf32> -> vector<8x1xf32>
    %215 = vector.broadcast %214 : vector<8x1xf32> to vector<8x8xf32>
    %216 = arith.mulf %211, %215 : vector<8x8xf32>
    %217 = arith.truncf %216 : vector<8x8xf32> to vector<8x8xbf16>
    %218 = arith.truncf %199 : vector<8x16xf32> to vector<8x16xbf16>
    %cst_90 = arith.constant dense<0.000000e+00> : vector<8x16xf32>
    %219 = tpu.matmul %217, %218, %cst_90 {dimension_numbers = #tpu.dot_dimension_numbers<[1], [0], [0], [1], [0, 0, 1, 1], [], []>} : vector<8x8xbf16>, vector<8x16xbf16>, vector<8x16xf32> -> vector<8x16xf32>
    %220 = vector.extract_strided_slice %196 {offsets = [0, 16], sizes = [8, 16], strides = [1, 1]} : vector<8x96xf32> to vector<8x16xf32>
    %221 = vector.extract_strided_slice %196 {offsets = [0, 48], sizes = [8, 16], strides = [1, 1]} : vector<8x96xf32> to vector<8x16xf32>
    %222 = vector.extract_strided_slice %196 {offsets = [0, 80], sizes = [8, 16], strides = [1, 1]} : vector<8x96xf32> to vector<8x16xf32>
    %223 = arith.truncf %220 : vector<8x16xf32> to vector<8x16xbf16>
    %224 = arith.truncf %221 : vector<8x16xf32> to vector<8x16xbf16>
    %cst_91 = arith.constant dense<0.000000e+00> : vector<8x8xf32>
    %225 = tpu.matmul %223, %224, %cst_91 {dimension_numbers = #tpu.dot_dimension_numbers<[1], [1], [0], [0], [0, 0, 1, 0], [], []>} : vector<8x16xbf16>, vector<8x16xbf16>, vector<8x8xf32> -> vector<8x8xf32>
    %226 = vector.broadcast %37 : f32 to vector<8x8xf32>
    %227 = arith.mulf %225, %226 : vector<8x8xf32>
    %228 = vector.broadcast %35 : vector<1x8xf32> to vector<8x8xf32>
    %229 = arith.addf %227, %228 : vector<8x8xf32>
    %cst_92 = arith.constant dense<0xFF800000> : vector<8xf32>
    %230 = vector.multi_reduction <maximumf>, %229, %cst_92 [1] : vector<8x8xf32> to vector<8xf32>
    %231 = vector.shape_cast %230 : vector<8xf32> to vector<8x1xf32>
    %232 = vector.broadcast %231 : vector<8x1xf32> to vector<8x8xf32>
    %233 = arith.subf %229, %232 : vector<8x8xf32>
    %234 = math.exp %233 : vector<8x8xf32>
    %cst_93 = arith.constant dense<0.000000e+00> : vector<8xf32>
    %235 = vector.multi_reduction <add>, %234, %cst_93 [1] : vector<8x8xf32> to vector<8xf32>
    %236 = vector.shape_cast %235 : vector<8xf32> to vector<8x1xf32>
    %237 = tpu.reciprocal %236 {approx = true} : vector<8x1xf32> -> vector<8x1xf32>
    %238 = vector.broadcast %237 : vector<8x1xf32> to vector<8x8xf32>
    %239 = arith.mulf %234, %238 : vector<8x8xf32>
    %240 = arith.truncf %239 : vector<8x8xf32> to vector<8x8xbf16>
    %241 = arith.truncf %222 : vector<8x16xf32> to vector<8x16xbf16>
    %cst_94 = arith.constant dense<0.000000e+00> : vector<8x16xf32>
    %242 = tpu.matmul %240, %241, %cst_94 {dimension_numbers = #tpu.dot_dimension_numbers<[1], [0], [0], [1], [0, 0, 1, 1], [], []>} : vector<8x8xbf16>, vector<8x16xbf16>, vector<8x16xf32> -> vector<8x16xf32>
    %243 = tpu.concatenate %219, %242 in 1 : vector<8x16xf32>, vector<8x16xf32> -> vector<8x32xf32>
    %244 = arith.truncf %243 : vector<8x32xf32> to vector<8x32xbf16>
    %c1_95 = arith.constant 1 : index
    %c0_96 = arith.constant 0 : index
    %c0_97 = arith.constant 0 : index
    %245 = vector.load %arg9[%c1_95, %c0_96, %c0_97] : memref<2x32x32xf32, #tpu.memory_space<vmem>>, vector<1x32x32xf32>
    %246 = vector.shape_cast %245 : vector<1x32x32xf32> to vector<32x32xf32>
    %247 = arith.truncf %246 : vector<32x32xf32> to vector<32x32xbf16>
    %cst_98 = arith.constant dense<0.000000e+00> : vector<8x32xf32>
    %248 = tpu.matmul %244, %247, %cst_98 {dimension_numbers = #tpu.dot_dimension_numbers<[1], [0], [0], [1], [0, 0, 1, 1], [], []>} : vector<8x32xbf16>, vector<32x32xbf16>, vector<8x32xf32> -> vector<8x32xf32>
    %c1_99 = arith.constant 1 : index
    %c0_100 = arith.constant 0 : index
    %c0_101 = arith.constant 0 : index
    %249 = vector.load %arg10[%c1_99, %c0_100, %c0_101] : memref<2x1x32xf32, #tpu.memory_space<vmem>>, vector<1x1x32xf32>
    %250 = vector.shape_cast %249 : vector<1x1x32xf32> to vector<1x32xf32>
    %251 = vector.broadcast %250 : vector<1x32xf32> to vector<8x32xf32>
    %252 = arith.addf %248, %251 : vector<8x32xf32>
    %253 = arith.addf %252, %187 : vector<8x32xf32>
    %c1_102 = arith.constant 1 : index
    %c0_103 = arith.constant 0 : index
    %c0_104 = arith.constant 0 : index
    %254 = vector.load %arg15[%c1_102, %c0_103, %c0_104] : memref<2x1x32xf32, #tpu.memory_space<vmem>>, vector<1x1x32xf32>
    %255 = vector.shape_cast %254 : vector<1x1x32xf32> to vector<1x32xf32>
    %c1_105 = arith.constant 1 : index
    %c0_106 = arith.constant 0 : index
    %c0_107 = arith.constant 0 : index
    %256 = vector.load %arg16[%c1_105, %c0_106, %c0_107] : memref<2x1x32xf32, #tpu.memory_space<vmem>>, vector<1x1x32xf32>
    %257 = vector.shape_cast %256 : vector<1x1x32xf32> to vector<1x32xf32>
    %cst_108 = arith.constant dense<0.000000e+00> : vector<8xf32>
    %258 = vector.multi_reduction <add>, %253, %cst_108 [1] : vector<8x32xf32> to vector<8xf32>
    %259 = vector.shape_cast %258 : vector<8xf32> to vector<8x1xf32>
    %cst_109 = arith.constant 3.200000e+01 : f32
    %260 = vector.broadcast %cst_109 : f32 to vector<8x1xf32>
    %261 = arith.divf %259, %260 : vector<8x1xf32>
    %262 = vector.broadcast %261 : vector<8x1xf32> to vector<8x32xf32>
    %263 = arith.subf %253, %262 : vector<8x32xf32>
    %264 = arith.mulf %263, %263 : vector<8x32xf32>
    %cst_110 = arith.constant dense<0.000000e+00> : vector<8xf32>
    %265 = vector.multi_reduction <add>, %264, %cst_110 [1] : vector<8x32xf32> to vector<8xf32>
    %266 = vector.shape_cast %265 : vector<8xf32> to vector<8x1xf32>
    %cst_111 = arith.constant 3.200000e+01 : f32
    %267 = vector.broadcast %cst_111 : f32 to vector<8x1xf32>
    %268 = arith.divf %266, %267 : vector<8x1xf32>
    %269 = vector.broadcast %261 : vector<8x1xf32> to vector<8x32xf32>
    %270 = arith.subf %253, %269 : vector<8x32xf32>
    %cst_112 = arith.constant 9.99999996E-13 : f32
    %271 = vector.broadcast %cst_112 : f32 to vector<8x1xf32>
    %272 = arith.addf %268, %271 : vector<8x1xf32>
    %273 = math.rsqrt %272 : vector<8x1xf32>
    %274 = vector.broadcast %273 : vector<8x1xf32> to vector<8x32xf32>
    %275 = arith.mulf %270, %274 : vector<8x32xf32>
    %276 = vector.broadcast %255 : vector<1x32xf32> to vector<8x32xf32>
    %277 = arith.mulf %275, %276 : vector<8x32xf32>
    %278 = vector.broadcast %257 : vector<1x32xf32> to vector<8x32xf32>
    %279 = arith.addf %277, %278 : vector<8x32xf32>
    %280 = arith.truncf %279 : vector<8x32xf32> to vector<8x32xbf16>
    %c1_113 = arith.constant 1 : index
    %c0_114 = arith.constant 0 : index
    %c0_115 = arith.constant 0 : index
    %281 = vector.load %arg11[%c1_113, %c0_114, %c0_115] : memref<2x32x64xf32, #tpu.memory_space<vmem>>, vector<1x32x64xf32>
    %282 = vector.shape_cast %281 : vector<1x32x64xf32> to vector<32x64xf32>
    %283 = arith.truncf %282 : vector<32x64xf32> to vector<32x64xbf16>
    %cst_116 = arith.constant dense<0.000000e+00> : vector<8x64xf32>
    %284 = tpu.matmul %280, %283, %cst_116 {dimension_numbers = #tpu.dot_dimension_numbers<[1], [0], [0], [1], [0, 0, 1, 1], [], []>} : vector<8x32xbf16>, vector<32x64xbf16>, vector<8x64xf32> -> vector<8x64xf32>
    %c1_117 = arith.constant 1 : index
    %c0_118 = arith.constant 0 : index
    %c0_119 = arith.constant 0 : index
    %285 = vector.load %arg12[%c1_117, %c0_118, %c0_119] : memref<2x1x64xf32, #tpu.memory_space<vmem>>, vector<1x1x64xf32>
    %286 = vector.shape_cast %285 : vector<1x1x64xf32> to vector<1x64xf32>
    %287 = vector.broadcast %286 : vector<1x64xf32> to vector<8x64xf32>
    %288 = arith.addf %284, %287 : vector<8x64xf32>
    %289 = arith.mulf %288, %288 : vector<8x64xf32>
    %290 = arith.mulf %288, %289 : vector<8x64xf32>
    %cst_120 = arith.constant 4.471500e-02 : f32
    %291 = vector.broadcast %cst_120 : f32 to vector<8x64xf32>
    %292 = arith.mulf %291, %290 : vector<8x64xf32>
    %293 = arith.addf %288, %292 : vector<8x64xf32>
    %cst_121 = arith.constant 0.797884583 : f32
    %294 = vector.broadcast %cst_121 : f32 to vector<8x64xf32>
    %295 = arith.mulf %294, %293 : vector<8x64xf32>
    %296 = math.tanh %295 : vector<8x64xf32>
    %cst_122 = arith.constant 1.000000e+00 : f32
    %297 = vector.broadcast %cst_122 : f32 to vector<8x64xf32>
    %298 = arith.addf %297, %296 : vector<8x64xf32>
    %cst_123 = arith.constant 5.000000e-01 : f32
    %299 = vector.broadcast %cst_123 : f32 to vector<8x64xf32>
    %300 = arith.mulf %299, %298 : vector<8x64xf32>
    %301 = arith.mulf %288, %300 : vector<8x64xf32>
    %302 = arith.truncf %301 : vector<8x64xf32> to vector<8x64xbf16>
    %c1_124 = arith.constant 1 : index
    %c0_125 = arith.constant 0 : index
    %c0_126 = arith.constant 0 : index
    %303 = vector.load %arg13[%c1_124, %c0_125, %c0_126] : memref<2x64x32xf32, #tpu.memory_space<vmem>>, vector<1x64x32xf32>
    %304 = vector.shape_cast %303 : vector<1x64x32xf32> to vector<64x32xf32>
    %305 = arith.truncf %304 : vector<64x32xf32> to vector<64x32xbf16>
    %cst_127 = arith.constant dense<0.000000e+00> : vector<8x32xf32>
    %306 = tpu.matmul %302, %305, %cst_127 {dimension_numbers = #tpu.dot_dimension_numbers<[1], [0], [0], [1], [0, 0, 1, 1], [], []>} : vector<8x64xbf16>, vector<64x32xbf16>, vector<8x32xf32> -> vector<8x32xf32>
    %c1_128 = arith.constant 1 : index
    %c0_129 = arith.constant 0 : index
    %c0_130 = arith.constant 0 : index
    %307 = vector.load %arg14[%c1_128, %c0_129, %c0_130] : memref<2x1x32xf32, #tpu.memory_space<vmem>>, vector<1x1x32xf32>
    %308 = vector.shape_cast %307 : vector<1x1x32xf32> to vector<1x32xf32>
    %309 = vector.broadcast %308 : vector<1x32xf32> to vector<8x32xf32>
    %310 = arith.addf %306, %309 : vector<8x32xf32>
    %311 = arith.addf %310, %279 : vector<8x32xf32>
    %c1_131 = arith.constant 1 : index
    %c0_132 = arith.constant 0 : index
    %c0_133 = arith.constant 0 : index
    %312 = vector.load %arg17[%c1_131, %c0_132, %c0_133] : memref<2x1x32xf32, #tpu.memory_space<vmem>>, vector<1x1x32xf32>
    %313 = vector.shape_cast %312 : vector<1x1x32xf32> to vector<1x32xf32>
    %c1_134 = arith.constant 1 : index
    %c0_135 = arith.constant 0 : index
    %c0_136 = arith.constant 0 : index
    %314 = vector.load %arg18[%c1_134, %c0_135, %c0_136] : memref<2x1x32xf32, #tpu.memory_space<vmem>>, vector<1x1x32xf32>
    %315 = vector.shape_cast %314 : vector<1x1x32xf32> to vector<1x32xf32>
    %cst_137 = arith.constant dense<0.000000e+00> : vector<8xf32>
    %316 = vector.multi_reduction <add>, %311, %cst_137 [1] : vector<8x32xf32> to vector<8xf32>
    %317 = vector.shape_cast %316 : vector<8xf32> to vector<8x1xf32>
    %cst_138 = arith.constant 3.200000e+01 : f32
    %318 = vector.broadcast %cst_138 : f32 to vector<8x1xf32>
    %319 = arith.divf %317, %318 : vector<8x1xf32>
    %320 = vector.broadcast %319 : vector<8x1xf32> to vector<8x32xf32>
    %321 = arith.subf %311, %320 : vector<8x32xf32>
    %322 = arith.mulf %321, %321 : vector<8x32xf32>
    %cst_139 = arith.constant dense<0.000000e+00> : vector<8xf32>
    %323 = vector.multi_reduction <add>, %322, %cst_139 [1] : vector<8x32xf32> to vector<8xf32>
    %324 = vector.shape_cast %323 : vector<8xf32> to vector<8x1xf32>
    %cst_140 = arith.constant 3.200000e+01 : f32
    %325 = vector.broadcast %cst_140 : f32 to vector<8x1xf32>
    %326 = arith.divf %324, %325 : vector<8x1xf32>
    %327 = vector.broadcast %319 : vector<8x1xf32> to vector<8x32xf32>
    %328 = arith.subf %311, %327 : vector<8x32xf32>
    %cst_141 = arith.constant 9.99999996E-13 : f32
    %329 = vector.broadcast %cst_141 : f32 to vector<8x1xf32>
    %330 = arith.addf %326, %329 : vector<8x1xf32>
    %331 = math.rsqrt %330 : vector<8x1xf32>
    %332 = vector.broadcast %331 : vector<8x1xf32> to vector<8x32xf32>
    %333 = arith.mulf %328, %332 : vector<8x32xf32>
    %334 = vector.broadcast %313 : vector<1x32xf32> to vector<8x32xf32>
    %335 = arith.mulf %333, %334 : vector<8x32xf32>
    %336 = vector.broadcast %315 : vector<1x32xf32> to vector<8x32xf32>
    %337 = arith.addf %335, %336 : vector<8x32xf32>
    %c0_142 = arith.constant 0 : index
    %c0_143 = arith.constant 0 : index
    %338 = vector.load %arg19[%c0_142, %c0_143] : memref<8x32xf32, #tpu.memory_space<vmem>>, vector<8x32xf32>
    tpu.vector_store %arg19[%c0_142, %c0_143], %337 {strides = array<i32>} : memref<8x32xf32, #tpu.memory_space<vmem>>, vector<8x32xf32>,
    return
  }
  func.func @transform_0(%arg0: i32) -> (i32, i32) {
    %c0_i32 = arith.constant 0 : i32
    %c0_i32_0 = arith.constant 0 : i32
    return %arg0, %c0_i32 : i32, i32
  }
  func.func @transform_1(%arg0: i32) -> (i32, i32, i32) {
    %c0_i32 = arith.constant 0 : i32
    %c0_i32_0 = arith.constant 0 : i32
    %c0_i32_1 = arith.constant 0 : i32
    return %arg0, %c0_i32, %c0_i32_0 : i32, i32, i32
  }
  func.func @transform_2(%arg0: i32) -> (i32, i32) {
    %c0_i32 = arith.constant 0 : i32
    %c0_i32_0 = arith.constant 0 : i32
    %c0_i32_1 = arith.constant 0 : i32
    return %c0_i32, %c0_i32_0 : i32, i32
  }
  func.func @transform_3(%arg0: i32) -> (i32, i32) {
    %c0_i32 = arith.constant 0 : i32
    %c0_i32_0 = arith.constant 0 : i32
    %c0_i32_1 = arith.constant 0 : i32
    return %c0_i32, %c0_i32_0 : i32, i32
  }
  func.func @transform_4(%arg0: i32) -> (i32, i32) {
    %c0_i32 = arith.constant 0 : i32
    %c0_i32_0 = arith.constant 0 : i32
    %c0_i32_1 = arith.constant 0 : i32
    return %c0_i32, %c0_i32_0 : i32, i32
  }
  func.func @transform_5(%arg0: i32) -> (i32, i32) {
    %c0_i32 = arith.constant 0 : i32
    %c0_i32_0 = arith.constant 0 : i32
    %c0_i32_1 = arith.constant 0 : i32
    return %c0_i32, %c0_i32_0 : i32, i32
  }
  func.func @transform_6(%arg0: i32) -> (i32, i32, i32) {
    %c0_i32 = arith.constant 0 : i32
    %c0_i32_0 = arith.constant 0 : i32
    %c0_i32_1 = arith.constant 0 : i32
    %c0_i32_2 = arith.constant 0 : i32
    return %c0_i32, %c0_i32_0, %c0_i32_1 : i32, i32, i32
  }
  func.func @transform_7(%arg0: i32) -> (i32, i32, i32) {
    %c0_i32 = arith.constant 0 : i32
    %c0_i32_0 = arith.constant 0 : i32
    %c0_i32_1 = arith.constant 0 : i32
    %c0_i32_2 = arith.constant 0 : i32
    return %c0_i32, %c0_i32_0, %c0_i32_1 : i32, i32, i32
  }
  func.func @transform_8(%arg0: i32) -> (i32, i32, i32) {
    %c0_i32 = arith.constant 0 : i32
    %c0_i32_0 = arith.constant 0 : i32
    %c0_i32_1 = arith.constant 0 : i32
    %c0_i32_2 = arith.constant 0 : i32
    return %c0_i32, %c0_i32_0, %c0_i32_1 : i32, i32, i32
  }
  func.func @transform_9(%arg0: i32) -> (i32, i32, i32) {
    %c0_i32 = arith.constant 0 : i32
    %c0_i32_0 = arith.constant 0 : i32
    %c0_i32_1 = arith.constant 0 : i32
    %c0_i32_2 = arith.constant 0 : i32
    return %c0_i32, %c0_i32_0, %c0_i32_1 : i32, i32, i32
  }
  func.func @transform_10(%arg0: i32) -> (i32, i32, i32) {
    %c0_i32 = arith.constant 0 : i32
    %c0_i32_0 = arith.constant 0 : i32
    %c0_i32_1 = arith.constant 0 : i32
    %c0_i32_2 = arith.constant 0 : i32
    return %c0_i32, %c0_i32_0, %c0_i32_1 : i32, i32, i32
  }
  func.func @transform_11(%arg0: i32) -> (i32, i32, i32) {
    %c0_i32 = arith.constant 0 : i32
    %c0_i32_0 = arith.constant 0 : i32
    %c0_i32_1 = arith.constant 0 : i32
    %c0_i32_2 = arith.constant 0 : i32
    return %c0_i32, %c0_i32_0, %c0_i32_1 : i32, i32, i32
  }
  func.func @transform_12(%arg0: i32) -> (i32, i32, i32) {
    %c0_i32 = arith.constant 0 : i32
    %c0_i32_0 = arith.constant 0 : i32
    %c0_i32_1 = arith.constant 0 : i32
    %c0_i32_2 = arith.constant 0 : i32
    return %c0_i32, %c0_i32_0, %c0_i32_1 : i32, i32, i32
  }
  func.func @transform_13(%arg0: i32) -> (i32, i32, i32) {
    %c0_i32 = arith.constant 0 : i32
    %c0_i32_0 = arith.constant 0 : i32
    %c0_i32_1 = arith.constant 0 : i32
    %c0_i32_2 = arith.constant 0 : i32
    return %c0_i32, %c0_i32_0, %c0_i32_1 : i32, i32, i32
  }
  func.func @transform_14(%arg0: i32) -> (i32, i32, i32) {
    %c0_i32 = arith.constant 0 : i32
    %c0_i32_0 = arith.constant 0 : i32
    %c0_i32_1 = arith.constant 0 : i32
    %c0_i32_2 = arith.constant 0 : i32
    return %c0_i32, %c0_i32_0, %c0_i32_1 : i32, i32, i32
  }
  func.func @transform_15(%arg0: i32) -> (i32, i32, i32) {
    %c0_i32 = arith.constant 0 : i32
    %c0_i32_0 = arith.constant 0 : i32
    %c0_i32_1 = arith.constant 0 : i32
    %c0_i32_2 = arith.constant 0 : i32
    return %c0_i32, %c0_i32_0, %c0_i32_1 : i32, i32, i32
  }
  func.func @transform_16(%arg0: i32) -> (i32, i32, i32) {
    %c0_i32 = arith.constant 0 : i32
    %c0_i32_0 = arith.constant 0 : i32
    %c0_i32_1 = arith.constant 0 : i32
    %c0_i32_2 = arith.constant 0 : i32
    return %c0_i32, %c0_i32_0, %c0_i32_1 : i32, i32, i32
  }
  func.func @transform_17(%arg0: i32) -> (i32, i32, i32) {
    %c0_i32 = arith.constant 0 : i32
    %c0_i32_0 = arith.constant 0 : i32
    %c0_i32_1 = arith.constant 0 : i32
    %c0_i32_2 = arith.constant 0 : i32
    return %c0_i32, %c0_i32_0, %c0_i32_1 : i32, i32, i32
  }
  func.func @transform_18(%arg0: i32) -> (i32, i32) {
    %c0_i32 = arith.constant 0 : i32
    %c0_i32_0 = arith.constant 0 : i32
    return %arg0, %c0_i32 : i32, i32
  }
}

</mosaic_0001>

<llo_original>
// kernel: tpu_custom_call.1
$region0: #{tpu_custom_call.1}
  #allocation0 [shape = 'u32[]', space=smem, size = 0x4, offset = 0x4, fixed_abs, tag = 'smem constant byte address 0x4 - core index']
  #allocation1 [shape = 'u32[144,128]{1,0:T(1,128)}', space=vmem, size = 0x12000, scoped, tag = 'internal scratch']
  %s0 = inlined_call_operand.vmem [shape: s32[16,1], index: 0, kind: input, shape index: {}]
  %s1 = inlined_call_operand.vmem [shape: f32[2,1,8], index: 1, kind: input, shape index: {}]
  %s2 = inlined_call_operand.vmem [shape: f32[100,32], index: 2, kind: input, shape index: {}]
  %s3 = inlined_call_operand.vmem [shape: f32[16,32], index: 3, kind: input, shape index: {}]
  %s4 = inlined_call_operand.vmem [shape: f32[1,32], index: 4, kind: input, shape index: {}]
  %s5 = inlined_call_operand.vmem [shape: f32[1,32], index: 5, kind: input, shape index: {}]
  %s6 = inlined_call_operand.vmem [shape: f32[2,32,96], index: 6, kind: input, shape index: {}]
  %s7 = inlined_call_operand.vmem [shape: f32[2,1,96], index: 7, kind: input, shape index: {}]
  %s8 = inlined_call_operand.vmem [shape: f32[2,32,32], index: 8, kind: input, shape index: {}]
  %s9 = inlined_call_operand.vmem [shape: f32[2,1,32], index: 9, kind: input, shape index: {}]
  %s10 = inlined_call_operand.vmem [shape: f32[2,32,64], index: 10, kind: input, shape index: {}]
  %s11 = inlined_call_operand.vmem [shape: f32[2,1,64], index: 11, kind: input, shape index: {}]
  %s12 = inlined_call_operand.vmem [shape: f32[2,64,32], index: 12, kind: input, shape index: {}]
  %s13 = inlined_call_operand.vmem [shape: f32[2,1,32], index: 13, kind: input, shape index: {}]
  %s14 = inlined_call_operand.vmem [shape: f32[2,1,32], index: 14, kind: input, shape index: {}]
  %s15 = inlined_call_operand.vmem [shape: f32[2,1,32], index: 15, kind: input, shape index: {}]
  %s16 = inlined_call_operand.vmem [shape: f32[2,1,32], index: 16, kind: input, shape index: {}]
  %s17 = inlined_call_operand.vmem [shape: f32[2,1,32], index: 17, kind: input, shape index: {}]
  %s18 = inlined_call_operand.hbm [shape: f32[16,32], index: 18, kind: output, shape index: {}]
  %s19 = sld [smem:[#allocation0]]
  $region105: #{tpu_custom_call.1} parent=0
    _
  %s21 = ssub.s32 1, %s19
  %s22 = scalar_select 0, %s21, %s19
  $region1: #{tpu_custom_call.1} parent=0
    #allocation2 [shape = 'u8[8192]{0}', space=vmem, size = 0x2000, scoped, tag = 'output window, operand 0']
    #allocation3 [shape = 's32[2]{0}', space=sflag, size = 0x8, scoped, tag = 'scoped memory for tpu_custom_call.1']
    %23 = vsyncpa [#allocation3], 0
    %s24 = scalar_lea.sflag [#allocation3], 1
    %25 = vsyncpa %s24, 0
    loop: start=0, step=1, limit=4
    $region2: #{tpu_custom_call.1} parent=1 // loop_pre_header
      _
    $region3: #{tpu_custom_call.1} parent=1 // loop_header
      %s27 = sphi 0, %s31
      %p28 = scmp.ge.s32.totalorder %s27, 4
      %s37 = sphi 0, %s39
      %s40 = sphi 0, %s37
      %s41 = sphi 0, %s40
      %s57 = sphi 0, %s41
      %s63 = sphi 0, %s65
      %s66 = sphi 0, %s63
      %s67 = sphi 0, %s66
      %s83 = sphi 0, %s67
      %s87 = sphi 0, %s87
      %s89 = sphi 0, %s87
      %s90 = sphi 0, %s89
      %s104 = sphi 0, %s90
      %s108 = sphi 0, %s108
      %s110 = sphi 0, %s108
      %s111 = sphi 0, %s110
      %s125 = sphi 0, %s111
      %s129 = sphi 0, %s129
      %s131 = sphi 0, %s129
      %s132 = sphi 0, %s131
      %s146 = sphi 0, %s132
      %s150 = sphi 0, %s150
      %s152 = sphi 0, %s150
      %s153 = sphi 0, %s152
      %s167 = sphi 0, %s153
      %s171 = sphi 0, %s171
      %s173 = sphi 0, %s171
      %s174 = sphi 0, %s173
      %s188 = sphi 0, %s174
      %s192 = sphi 0, %s192
      %s194 = sphi 0, %s192
      %s195 = sphi 0, %s194
      %s209 = sphi 0, %s195
      %s213 = sphi 0, %s213
      %s215 = sphi 0, %s213
      %s216 = sphi 0, %s215
      %s230 = sphi 0, %s216
      %s234 = sphi 0, %s234
      %s236 = sphi 0, %s234
      %s237 = sphi 0, %s236
      %s251 = sphi 0, %s237
      %s255 = sphi 0, %s255
      %s257 = sphi 0, %s255
      %s258 = sphi 0, %s257
      %s272 = sphi 0, %s258
      %s276 = sphi 0, %s276
      %s278 = sphi 0, %s276
      %s279 = sphi 0, %s278
      %s293 = sphi 0, %s279
      %s297 = sphi 0, %s297
      %s299 = sphi 0, %s297
      %s300 = sphi 0, %s299
      %s314 = sphi 0, %s300
      %s318 = sphi 0, %s318
      %s320 = sphi 0, %s318
      %s321 = sphi 0, %s320
      %s335 = sphi 0, %s321
      %s339 = sphi 0, %s339
      %s341 = sphi 0, %s339
      %s342 = sphi 0, %s341
      %s356 = sphi 0, %s342
      %s360 = sphi 0, %s360
      %s362 = sphi 0, %s360
      %s363 = sphi 0, %s362
      %s377 = sphi 0, %s363
      %s381 = sphi 0, %s381
      %s383 = sphi 0, %s381
      %s384 = sphi 0, %s383
      %s398 = sphi 0, %s384
      %s402 = sphi 0, %s402
      %s404 = sphi 0, %s402
      %s405 = sphi 0, %s404
      %s419 = sphi 0, %s405
      %s425 = sphi 0, %s427
      %s428 = sphi 0, %s425
      %s429 = sphi 0, %s428
      %s445 = sphi 0, %s429
    $region4: #{tpu_custom_call.1} parent=1 // loop_header_branch
      %30 = sbr.rel (%p28) target = $region8
    $region5: #{tpu_custom_call.1} parent=1 // loop_body
      %s32 = ssub.s32 %s27, 1
      %s33 = ssub.s32 %s27, 2
      %s34 = sadd.s32 %s27, 1
      %s35 = ssub.s32 %s27, %s34
      %p36 = scmp.eq.s32.totalorder %s35, 0
      %s38 = sadd.s32 %s37, 1
      %s39 = scalar_select %p36, %s37, %s38
      %p42 = pneg %p36
      %p43 = scmp.eq.s32.totalorder %s27, 1
      %p44 = por %p42, %p43
      %p45 = scmp.ne.s32.totalorder %s37, %s40
      %p46 = scmp.eq.s32.totalorder %s27, 0
      %p47 = por %p45, %p46
      %p48 = scmp.ne.s32.totalorder %s37, %s40
      %p49 = scmp.eq.s32.totalorder %s32, 1
      %p50 = por %p48, %p49
      %p51 = scmp.ne.s32.totalorder %s40, %s41
      %p52 = scmp.eq.s32.totalorder %s32, 0
      %p53 = por %p51, %p52
      %p54 = scmp.ne.s32.totalorder %s40, %s41
      %p55 = scmp.eq.s32.totalorder %s33, 1
      %p56 = por %p54, %p55
      %p58 = scmp.ne.s32.totalorder %s41, %s57
      %p59 = scmp.eq.s32.totalorder %s33, 0
      %p60 = por %p58, %p59
      %s61 = ssub.s32 %s27, %s34
      %p62 = scmp.eq.s32.totalorder %s61, 0
      %s64 = sadd.s32 %s63, 1
      %s65 = scalar_select %p62, %s63, %s64
      %p68 = pneg %p62
      %p69 = scmp.eq.s32.totalorder %s27, 1
      %p70 = por %p68, %p69
      %p71 = scmp.ne.s32.totalorder %s63, %s66
      %p72 = scmp.eq.s32.totalorder %s27, 0
      %p73 = por %p71, %p72
      %p74 = scmp.ne.s32.totalorder %s63, %s66
      %p75 = scmp.eq.s32.totalorder %s32, 1
      %p76 = por %p74, %p75
      %p77 = scmp.ne.s32.totalorder %s66, %s67
      %p78 = scmp.eq.s32.totalorder %s32, 0
      %p79 = por %p77, %p78
      %p80 = scmp.ne.s32.totalorder %s66, %s67
      %p81 = scmp.eq.s32.totalorder %s33, 1
      %p82 = por %p80, %p81
      %p84 = scmp.ne.s32.totalorder %s67, %s83
      %p85 = scmp.eq.s32.totalorder %s33, 0
      %p86 = por %p84, %p85
      %s88 = sadd.s32 %s87, 1
      %p91 = scmp.eq.s32.totalorder %s27, 1
      %p92 = scmp.ne.s32.totalorder %s87, %s89
      %p93 = scmp.eq.s32.totalorder %s27, 0
      %p94 = por %p92, %p93
      %p95 = scmp.ne.s32.totalorder %s87, %s89
      %p96 = scmp.eq.s32.totalorder %s32, 1
      %p97 = por %p95, %p96
      %p98 = scmp.ne.s32.totalorder %s89, %s90
      %p99 = scmp.eq.s32.totalorder %s32, 0
      %p100 = por %p98, %p99
      %p101 = scmp.ne.s32.totalorder %s89, %s90
      %p102 = scmp.eq.s32.totalorder %s33, 1
      %p103 = por %p101, %p102
      %p105 = scmp.ne.s32.totalorder %s90, %s104
      %p106 = scmp.eq.s32.totalorder %s33, 0
      %p107 = por %p105, %p106
      %s109 = sadd.s32 %s108, 1
      %p112 = scmp.eq.s32.totalorder %s27, 1
      %p113 = scmp.ne.s32.totalorder %s108, %s110
      %p114 = scmp.eq.s32.totalorder %s27, 0
      %p115 = por %p113, %p114
      %p116 = scmp.ne.s32.totalorder %s108, %s110
      %p117 = scmp.eq.s32.totalorder %s32, 1
      %p118 = por %p116, %p117
      %p119 = scmp.ne.s32.totalorder %s110, %s111
      %p120 = scmp.eq.s32.totalorder %s32, 0
      %p121 = por %p119, %p120
      %p122 = scmp.ne.s32.totalorder %s110, %s111
      %p123 = scmp.eq.s32.totalorder %s33, 1
      %p124 = por %p122, %p123
      %p126 = scmp.ne.s32.totalorder %s111, %s125
      %p127 = scmp.eq.s32.totalorder %s33, 0
      %p128 = por %p126, %p127
      %s130 = sadd.s32 %s129, 1
      %p133 = scmp.eq.s32.totalorder %s27, 1
      %p134 = scmp.ne.s32.totalorder %s129, %s131
      %p135 = scmp.eq.s32.totalorder %s27, 0
      %p136 = por %p134, %p135
      %p137 = scmp.ne.s32.totalorder %s129, %s131
      %p138 = scmp.eq.s32.totalorder %s32, 1
      %p139 = por %p137, %p138
      %p140 = scmp.ne.s32.totalorder %s131, %s132
      %p141 = scmp.eq.s32.totalorder %s32, 0
      %p142 = por %p140, %p141
      %p143 = scmp.ne.s32.totalorder %s131, %s132
      %p144 = scmp.eq.s32.totalorder %s33, 1
      %p145 = por %p143, %p144
      %p147 = scmp.ne.s32.totalorder %s132, %s146
      %p148 = scmp.eq.s32.totalorder %s33, 0
      %p149 = por %p147, %p148
      %s151 = sadd.s32 %s150, 1
      %p154 = scmp.eq.s32.totalorder %s27, 1
      %p155 = scmp.ne.s32.totalorder %s150, %s152
      %p156 = scmp.eq.s32.totalorder %s27, 0
      %p157 = por %p155, %p156
      %p158 = scmp.ne.s32.totalorder %s150, %s152
      %p159 = scmp.eq.s32.totalorder %s32, 1
      %p160 = por %p158, %p159
      %p161 = scmp.ne.s32.totalorder %s152, %s153
      %p162 = scmp.eq.s32.totalorder %s32, 0
      %p163 = por %p161, %p162
      %p164 = scmp.ne.s32.totalorder %s152, %s153
      %p165 = scmp.eq.s32.totalorder %s33, 1
      %p166 = por %p164, %p165
      %p168 = scmp.ne.s32.totalorder %s153, %s167
      %p169 = scmp.eq.s32.totalorder %s33, 0
      %p170 = por %p168, %p169
      %s172 = sadd.s32 %s171, 1
      %p175 = scmp.eq.s32.totalorder %s27, 1
      %p176 = scmp.ne.s32.totalorder %s171, %s173
      %p177 = scmp.eq.s32.totalorder %s27, 0
      %p178 = por %p176, %p177
      %p179 = scmp.ne.s32.totalorder %s171, %s173
      %p180 = scmp.eq.s32.totalorder %s32, 1
      %p181 = por %p179, %p180
      %p182 = scmp.ne.s32.totalorder %s173, %s174
      %p183 = scmp.eq.s32.totalorder %s32, 0
      %p184 = por %p182, %p183
      %p185 = scmp.ne.s32.totalorder %s173, %s174
      %p186 = scmp.eq.s32.totalorder %s33, 1
      %p187 = por %p185, %p186
      %p189 = scmp.ne.s32.totalorder %s174, %s188
      %p190 = scmp.eq.s32.totalorder %s33, 0
      %p191 = por %p189, %p190
      %s193 = sadd.s32 %s192, 1
      %p196 = scmp.eq.s32.totalorder %s27, 1
      %p197 = scmp.ne.s32.totalorder %s192, %s194
      %p198 = scmp.eq.s32.totalorder %s27, 0
      %p199 = por %p197, %p198
      %p200 = scmp.ne.s32.totalorder %s192, %s194
      %p201 = scmp.eq.s32.totalorder %s32, 1
      %p202 = por %p200, %p201
      %p203 = scmp.ne.s32.totalorder %s194, %s195
      %p204 = scmp.eq.s32.totalorder %s32, 0
      %p205 = por %p203, %p204
      %p206 = scmp.ne.s32.totalorder %s194, %s195
      %p207 = scmp.eq.s32.totalorder %s33, 1
      %p208 = por %p206, %p207
      %p210 = scmp.ne.s32.totalorder %s195, %s209
      %p211 = scmp.eq.s32.totalorder %s33, 0
      %p212 = por %p210, %p211
      %s214 = sadd.s32 %s213, 1
      %p217 = scmp.eq.s32.totalorder %s27, 1
      %p218 = scmp.ne.s32.totalorder %s213, %s215
      %p219 = scmp.eq.s32.totalorder %s27, 0
      %p220 = por %p218, %p219
      %p221 = scmp.ne.s32.totalorder %s213, %s215
      %p222 = scmp.eq.s32.totalorder %s32, 1
      %p223 = por %p221, %p222
      %p224 = scmp.ne.s32.totalorder %s215, %s216
      %p225 = scmp.eq.s32.totalorder %s32, 0
      %p226 = por %p224, %p225
      %p227 = scmp.ne.s32.totalorder %s215, %s216
      %p228 = scmp.eq.s32.totalorder %s33, 1
      %p229 = por %p227, %p228
      %p231 = scmp.ne.s32.totalorder %s216, %s230
      %p232 = scmp.eq.s32.totalorder %s33, 0
      %p233 = por %p231, %p232
      %s235 = sadd.s32 %s234, 1
      %p238 = scmp.eq.s32.totalorder %s27, 1
      %p239 = scmp.ne.s32.totalorder %s234, %s236
      %p240 = scmp.eq.s32.totalorder %s27, 0
      %p241 = por %p239, %p240
      %p242 = scmp.ne.s32.totalorder %s234, %s236
      %p243 = scmp.eq.s32.totalorder %s32, 1
      %p244 = por %p242, %p243
      %p245 = scmp.ne.s32.totalorder %s236, %s237
      %p246 = scmp.eq.s32.totalorder %s32, 0
      %p247 = por %p245, %p246
      %p248 = scmp.ne.s32.totalorder %s236, %s237
      %p249 = scmp.eq.s32.totalorder %s33, 1
      %p250 = por %p248, %p249
      %p252 = scmp.ne.s32.totalorder %s237, %s251
      %p253 = scmp.eq.s32.totalorder %s33, 0
      %p254 = por %p252, %p253
      %s256 = sadd.s32 %s255, 1
      %p259 = scmp.eq.s32.totalorder %s27, 1
      %p260 = scmp.ne.s32.totalorder %s255, %s257
      %p261 = scmp.eq.s32.totalorder %s27, 0
      %p262 = por %p260, %p261
      %p263 = scmp.ne.s32.totalorder %s255, %s257
      %p264 = scmp.eq.s32.totalorder %s32, 1
      %p265 = por %p263, %p264
      %p266 = scmp.ne.s32.totalorder %s257, %s258
      %p267 = scmp.eq.s32.totalorder %s32, 0
      %p268 = por %p266, %p267
      %p269 = scmp.ne.s32.totalorder %s257, %s258
      %p270 = scmp.eq.s32.totalorder %s33, 1
      %p271 = por %p269, %p270
      %p273 = scmp.ne.s32.totalorder %s258, %s272
      %p274 = scmp.eq.s32.totalorder %s33, 0
      %p275 = por %p273, %p274
      %s277 = sadd.s32 %s276, 1
      %p280 = scmp.eq.s32.totalorder %s27, 1
      %p281 = scmp.ne.s32.totalorder %s276, %s278
      %p282 = scmp.eq.s32.totalorder %s27, 0
      %p283 = por %p281, %p282
      %p284 = scmp.ne.s32.totalorder %s276, %s278
      %p285 = scmp.eq.s32.totalorder %s32, 1
      %p286 = por %p284, %p285
      %p287 = scmp.ne.s32.totalorder %s278, %s279
      %p288 = scmp.eq.s32.totalorder %s32, 0
      %p289 = por %p287, %p288
      %p290 = scmp.ne.s32.totalorder %s278, %s279
      %p291 = scmp.eq.s32.totalorder %s33, 1
      %p292 = por %p290, %p291
      %p294 = scmp.ne.s32.totalorder %s279, %s293
      %p295 = scmp.eq.s32.totalorder %s33, 0
      %p296 = por %p294, %p295
      %s298 = sadd.s32 %s297, 1
      %p301 = scmp.eq.s32.totalorder %s27, 1
      %p302 = scmp.ne.s32.totalorder %s297, %s299
      %p303 = scmp.eq.s32.totalorder %s27, 0
      %p304 = por %p302, %p303
      %p305 = scmp.ne.s32.totalorder %s297, %s299
      %p306 = scmp.eq.s32.totalorder %s32, 1
      %p307 = por %p305, %p306
      %p308 = scmp.ne.s32.totalorder %s299, %s300
      %p309 = scmp.eq.s32.totalorder %s32, 0
      %p310 = por %p308, %p309
      %p311 = scmp.ne.s32.totalorder %s299, %s300
      %p312 = scmp.eq.s32.totalorder %s33, 1
      %p313 = por %p311, %p312
      %p315 = scmp.ne.s32.totalorder %s300, %s314
      %p316 = scmp.eq.s32.totalorder %s33, 0
      %p317 = por %p315, %p316
      %s319 = sadd.s32 %s318, 1
      %p322 = scmp.eq.s32.totalorder %s27, 1
      %p323 = scmp.ne.s32.totalorder %s318, %s320
      %p324 = scmp.eq.s32.totalorder %s27, 0
      %p325 = por %p323, %p324
      %p326 = scmp.ne.s32.totalorder %s318, %s320
      %p327 = scmp.eq.s32.totalorder %s32, 1
      %p328 = por %p326, %p327
      %p329 = scmp.ne.s32.totalorder %s320, %s321
      %p330 = scmp.eq.s32.totalorder %s32, 0
      %p331 = por %p329, %p330
      %p332 = scmp.ne.s32.totalorder %s320, %s321
      %p333 = scmp.eq.s32.totalorder %s33, 1
      %p334 = por %p332, %p333
      %p336 = scmp.ne.s32.totalorder %s321, %s335
      %p337 = scmp.eq.s32.totalorder %s33, 0
      %p338 = por %p336, %p337
      %s340 = sadd.s32 %s339, 1
      %p343 = scmp.eq.s32.totalorder %s27, 1
      %p344 = scmp.ne.s32.totalorder %s339, %s341
      %p345 = scmp.eq.s32.totalorder %s27, 0
      %p346 = por %p344, %p345
      %p347 = scmp.ne.s32.totalorder %s339, %s341
      %p348 = scmp.eq.s32.totalorder %s32, 1
      %p349 = por %p347, %p348
      %p350 = scmp.ne.s32.totalorder %s341, %s342
      %p351 = scmp.eq.s32.totalorder %s32, 0
      %p352 = por %p350, %p351
      %p353 = scmp.ne.s32.totalorder %s341, %s342
      %p354 = scmp.eq.s32.totalorder %s33, 1
      %p355 = por %p353, %p354
      %p357 = scmp.ne.s32.totalorder %s342, %s356
      %p358 = scmp.eq.s32.totalorder %s33, 0
      %p359 = por %p357, %p358
      %s361 = sadd.s32 %s360, 1
      %p364 = scmp.eq.s32.totalorder %s27, 1
      %p365 = scmp.ne.s32.totalorder %s360, %s362
      %p366 = scmp.eq.s32.totalorder %s27, 0
      %p367 = por %p365, %p366
      %p368 = scmp.ne.s32.totalorder %s360, %s362
      %p369 = scmp.eq.s32.totalorder %s32, 1
      %p370 = por %p368, %p369
      %p371 = scmp.ne.s32.totalorder %s362, %s363
      %p372 = scmp.eq.s32.totalorder %s32, 0
      %p373 = por %p371, %p372
      %p374 = scmp.ne.s32.totalorder %s362, %s363
      %p375 = scmp.eq.s32.totalorder %s33, 1
      %p376 = por %p374, %p375
      %p378 = scmp.ne.s32.totalorder %s363, %s377
      %p379 = scmp.eq.s32.totalorder %s33, 0
      %p380 = por %p378, %p379
      %s382 = sadd.s32 %s381, 1
      %p385 = scmp.eq.s32.totalorder %s27, 1
      %p386 = scmp.ne.s32.totalorder %s381, %s383
      %p387 = scmp.eq.s32.totalorder %s27, 0
      %p388 = por %p386, %p387
      %p389 = scmp.ne.s32.totalorder %s381, %s383
      %p390 = scmp.eq.s32.totalorder %s32, 1
      %p391 = por %p389, %p390
      %p392 = scmp.ne.s32.totalorder %s383, %s384
      %p393 = scmp.eq.s32.totalorder %s32, 0
      %p394 = por %p392, %p393
      %p395 = scmp.ne.s32.totalorder %s383, %s384
      %p396 = scmp.eq.s32.totalorder %s33, 1
      %p397 = por %p395, %p396
      %p399 = scmp.ne.s32.totalorder %s384, %s398
      %p400 = scmp.eq.s32.totalorder %s33, 0
      %p401 = por %p399, %p400
      %s403 = sadd.s32 %s402, 1
      %p406 = scmp.eq.s32.totalorder %s27, 1
      %p407 = scmp.ne.s32.totalorder %s402, %s404
      %p408 = scmp.eq.s32.totalorder %s27, 0
      %p409 = por %p407, %p408
      %p410 = scmp.ne.s32.totalorder %s402, %s404
      %p411 = scmp.eq.s32.totalorder %s32, 1
      %p412 = por %p410, %p411
      %p413 = scmp.ne.s32.totalorder %s404, %s405
      %p414 = scmp.eq.s32.totalorder %s32, 0
      %p415 = por %p413, %p414
      %p416 = scmp.ne.s32.totalorder %s404, %s405
      %p417 = scmp.eq.s32.totalorder %s33, 1
      %p418 = por %p416, %p417
      %p420 = scmp.ne.s32.totalorder %s405, %s419
      %p421 = scmp.eq.s32.totalorder %s33, 0
      %p422 = por %p420, %p421
      %s423 = ssub.s32 %s27, %s34
      %p424 = scmp.eq.s32.totalorder %s423, 0
      %s426 = sadd.s32 %s425, 1
      %s427 = scalar_select %p424, %s425, %s426
      %p430 = pneg %p424
      %p431 = scmp.eq.s32.totalorder %s27, 1
      %p432 = por %p430, %p431
      %p433 = scmp.ne.s32.totalorder %s425, %s428
      %p434 = scmp.eq.s32.totalorder %s27, 0
      %p435 = por %p433, %p434
      %p436 = scmp.ne.s32.totalorder %s425, %s428
      %p437 = scmp.eq.s32.totalorder %s32, 1
      %p438 = por %p436, %p437
      %p439 = scmp.ne.s32.totalorder %s428, %s429
      %p440 = scmp.eq.s32.totalorder %s32, 0
      %p441 = por %p439, %p440
      %p442 = scmp.ne.s32.totalorder %s428, %s429
      %p443 = scmp.eq.s32.totalorder %s33, 1
      %p444 = por %p442, %p443
      %p446 = scmp.ne.s32.totalorder %s429, %s445
      %p447 = scmp.eq.s32.totalorder %s33, 0
      %p448 = por %p446, %p447
      %p449 = scmp.le.s32.totalorder 1, %s27
      %p450 = scmp.lt.s32.totalorder %s27, 3
      %p451 = pnand %p449, %p450
      %p452 = pneg %p451
      // Predicated region
      $region9: #{tpu_custom_call.1} parent=5 // pred_check
        _
      $region10: #{tpu_custom_call.1} parent=5 // pred_check_branch
        %454 = sbr.rel (%p451) target = $region12
      $region11: #{tpu_custom_call.1} parent=5 // pred_region
        %s455 = ssub.s32 %s27, 1
        // Predicated region
        $region13: #{tpu_custom_call.1} parent=11 // pred_check
          %p456 = pneg %p100
        $region14: #{tpu_custom_call.1} parent=11 // pred_check_branch
          %458 = sbr.rel (%p456) target = $region16
        $region15: #{tpu_custom_call.1} parent=11 // pred_region
          _
        $region16: #{tpu_custom_call.1} parent=11 // pred_fallthru
          _
        // Predicated region
        $region17: #{tpu_custom_call.1} parent=11 // pred_check
          %p459 = pneg %p121
        $region18: #{tpu_custom_call.1} parent=11 // pred_check_branch
          %461 = sbr.rel (%p459) target = $region20
        $region19: #{tpu_custom_call.1} parent=11 // pred_region
          _
        $region20: #{tpu_custom_call.1} parent=11 // pred_fallthru
          _
        // Predicated region
        $region21: #{tpu_custom_call.1} parent=11 // pred_check
          %p462 = pneg %p142
        $region22: #{tpu_custom_call.1} parent=11 // pred_check_branch
          %464 = sbr.rel (%p462) target = $region24
        $region23: #{tpu_custom_call.1} parent=11 // pred_region
          _
        $region24: #{tpu_custom_call.1} parent=11 // pred_fallthru
          _
        // Predicated region
        $region25: #{tpu_custom_call.1} parent=11 // pred_check
          %p465 = pneg %p163
        $region26: #{tpu_custom_call.1} parent=11 // pred_check_branch
          %467 = sbr.rel (%p465) target = $region28
        $region27: #{tpu_custom_call.1} parent=11 // pred_region
          _
        $region28: #{tpu_custom_call.1} parent=11 // pred_fallthru
          _
        // Predicated region
        $region29: #{tpu_custom_call.1} parent=11 // pred_check
          %p468 = pneg %p184
        $region30: #{tpu_custom_call.1} parent=11 // pred_check_branch
          %470 = sbr.rel (%p468) target = $region32
        $region31: #{tpu_custom_call.1} parent=11 // pred_region
          _
        $region32: #{tpu_custom_call.1} parent=11 // pred_fallthru
          _
        // Predicated region
        $region33: #{tpu_custom_call.1} parent=11 // pred_check
          %p471 = pneg %p205
        $region34: #{tpu_custom_call.1} parent=11 // pred_check_branch
          %473 = sbr.rel (%p471) target = $region36
        $region35: #{tpu_custom_call.1} parent=11 // pred_region
          _
        $region36: #{tpu_custom_call.1} parent=11 // pred_fallthru
          _
        // Predicated region
        $region37: #{tpu_custom_call.1} parent=11 // pred_check
          %p474 = pneg %p226
        $region38: #{tpu_custom_call.1} parent=11 // pred_check_branch
          %476 = sbr.rel (%p474) target = $region40
        $region39: #{tpu_custom_call.1} parent=11 // pred_region
          _
        $region40: #{tpu_custom_call.1} parent=11 // pred_fallthru
          _
        // Predicated region
        $region41: #{tpu_custom_call.1} parent=11 // pred_check
          %p477 = pneg %p247
        $region42: #{tpu_custom_call.1} parent=11 // pred_check_branch
          %479 = sbr.rel (%p477) target = $region44
        $region43: #{tpu_custom_call.1} parent=11 // pred_region
          _
        $region44: #{tpu_custom_call.1} parent=11 // pred_fallthru
          _
        // Predicated region
        $region45: #{tpu_custom_call.1} parent=11 // pred_check
          %p480 = pneg %p268
        $region46: #{tpu_custom_call.1} parent=11 // pred_check_branch
          %482 = sbr.rel (%p480) target = $region48
        $region47: #{tpu_custom_call.1} parent=11 // pred_region
          _
        $region48: #{tpu_custom_call.1} parent=11 // pred_fallthru
          _
        // Predicated region
        $region49: #{tpu_custom_call.1} parent=11 // pred_check
          %p483 = pneg %p289
        $region50: #{tpu_custom_call.1} parent=11 // pred_check_branch
          %485 = sbr.rel (%p483) target = $region52
        $region51: #{tpu_custom_call.1} parent=11 // pred_region
          _
        $region52: #{tpu_custom_call.1} parent=11 // pred_fallthru
          _
        // Predicated region
        $region53: #{tpu_custom_call.1} parent=11 // pred_check
          %p486 = pneg %p310
        $region54: #{tpu_custom_call.1} parent=11 // pred_check_branch
          %488 = sbr.rel (%p486) target = $region56
        $region55: #{tpu_custom_call.1} parent=11 // pred_region
          _
        $region56: #{tpu_custom_call.1} parent=11 // pred_fallthru
          _
        // Predicated region
        $region57: #{tpu_custom_call.1} parent=11 // pred_check
          %p489 = pneg %p331
        $region58: #{tpu_custom_call.1} parent=11 // pred_check_branch
          %491 = sbr.rel (%p489) target = $region60
        $region59: #{tpu_custom_call.1} parent=11 // pred_region
          _
        $region60: #{tpu_custom_call.1} parent=11 // pred_fallthru
          _
        // Predicated region
        $region61: #{tpu_custom_call.1} parent=11 // pred_check
          %p492 = pneg %p352
        $region62: #{tpu_custom_call.1} parent=11 // pred_check_branch
          %494 = sbr.rel (%p492) target = $region64
        $region63: #{tpu_custom_call.1} parent=11 // pred_region
          _
        $region64: #{tpu_custom_call.1} parent=11 // pred_fallthru
          _
        // Predicated region
        $region65: #{tpu_custom_call.1} parent=11 // pred_check
          %p495 = pneg %p373
        $region66: #{tpu_custom_call.1} parent=11 // pred_check_branch
          %497 = sbr.rel (%p495) target = $region68
        $region67: #{tpu_custom_call.1} parent=11 // pred_region
          _
        $region68: #{tpu_custom_call.1} parent=11 // pred_fallthru
          _
        // Predicated region
        $region69: #{tpu_custom_call.1} parent=11 // pred_check
          %p498 = pneg %p394
        $region70: #{tpu_custom_call.1} parent=11 // pred_check_branch
          %500 = sbr.rel (%p498) target = $region72
        $region71: #{tpu_custom_call.1} parent=11 // pred_region
          _
        $region72: #{tpu_custom_call.1} parent=11 // pred_fallthru
          _
        // Predicated region
        $region73: #{tpu_custom_call.1} parent=11 // pred_check
          %p501 = pneg %p415
        $region74: #{tpu_custom_call.1} parent=11 // pred_check_branch
          %503 = sbr.rel (%p501) target = $region76
        $region75: #{tpu_custom_call.1} parent=11 // pred_region
          _
        $region76: #{tpu_custom_call.1} parent=11 // pred_fallthru
          _
      $region12: #{tpu_custom_call.1} parent=5 // pred_fallthru
        _
      %p504 = scmp.lt.s32.totalorder %s27, 2
      // Predicated region
      $region77: #{tpu_custom_call.1} parent=5 // pred_check
        %p505 = pneg %p504
      $region78: #{tpu_custom_call.1} parent=5 // pred_check_branch
        %507 = sbr.rel (%p505) target = $region80
      $region79: #{tpu_custom_call.1} parent=5 // pred_region
        // Predicated region
        $region81: #{tpu_custom_call.1} parent=79 // pred_check
          %p508 = pneg %p47
        $region82: #{tpu_custom_call.1} parent=79 // pred_check_branch
          %510 = sbr.rel (%p508) target = $region84
        $region83: #{tpu_custom_call.1} parent=79 // pred_region
          %p511 = scmp.lt.s32.totalorder %s27, 1
          %s512 = scalar_select %p511, %s27, 1
          %s513 = smul.addr %s512, 8
          %s514 = scalar_lea.vmem %s0, %s513
        $region84: #{tpu_custom_call.1} parent=79 // pred_fallthru
          _
        // Predicated region
        $region85: #{tpu_custom_call.1} parent=79 // pred_check
          %p515 = pneg %p73
        $region86: #{tpu_custom_call.1} parent=79 // pred_check_branch
          %517 = sbr.rel (%p515) target = $region88
        $region87: #{tpu_custom_call.1} parent=79 // pred_region
          %p518 = scmp.lt.s32.totalorder %s27, 1
          %s519 = scalar_select %p518, %s27, 1
          %s520 = scalar_lea.vmem %s1, %s519
        $region88: #{tpu_custom_call.1} parent=79 // pred_fallthru
          _
      $region80: #{tpu_custom_call.1} parent=5 // pred_fallthru
        _
      %p521 = scmp.le.s32.totalorder 1, %s27
      %p522 = scmp.lt.s32.totalorder %s27, 3
      %p523 = pnand %p521, %p522
      %p524 = pneg %p523
      // Predicated region
      $region89: #{tpu_custom_call.1} parent=5 // pred_check
        _
      $region90: #{tpu_custom_call.1} parent=5 // pred_check_branch
        %526 = sbr.rel (%p523) target = $region92
      $region91: #{tpu_custom_call.1} parent=5 // pred_region
        %s527 = ssub.s32 %s27, 1
        %p528 = scmp.lt.s32.totalorder %s32, 1
        %s529 = scalar_select %p528, %s32, 1
        %s530 = smul.addr %s529, 8
        %s531 = scalar_lea.vmem %s0, %s530
        %p532 = pneg %p53
        %p533 = pneg %p50
        %p534 = scmp.lt.s32.totalorder %s32, 1
        %s535 = scalar_select %p534, %s32, 1
        %s536 = scalar_lea.vmem %s1, %s535
        %p537 = pneg %p79
        %p538 = pneg %p76
        %p539 = pneg %p100
        %p540 = pneg %p97
        %p541 = pneg %p121
        %p542 = pneg %p118
        %p543 = pneg %p142
        %p544 = pneg %p139
        %p545 = pneg %p163
        %p546 = pneg %p160
        %p547 = pneg %p184
        %p548 = pneg %p181
        %p549 = pneg %p205
        %p550 = pneg %p202
        %p551 = pneg %p226
        %p552 = pneg %p223
        %p553 = pneg %p247
        %p554 = pneg %p244
        %p555 = pneg %p268
        %p556 = pneg %p265
        %p557 = pneg %p289
        %p558 = pneg %p286
        %p559 = pneg %p310
        %p560 = pneg %p307
        %p561 = pneg %p331
        %p562 = pneg %p328
        %p563 = pneg %p352
        %p564 = pneg %p349
        %p565 = pneg %p373
        %p566 = pneg %p370
        %p567 = pneg %p394
        %p568 = pneg %p391
        %p569 = pneg %p415
        %p570 = pneg %p412
        %p571 = pneg %p441
        %p572 = pneg %p438
        %s573 = sand.u32 %s428, 1
        %s574 = scalar_lea.sflag [#allocation3], %s573
        %s575 = sand.u32 %s428, 1
        %s576 = smul.addr %s575, 8
        %s577 = scalar_lea.vmem [#allocation2], %s576
        %p578 = scmp.lt.s32.totalorder %s32, 1
        %s579 = scalar_select %p578, %s32, 1
        %s580 = smul.addr %s579, 8
        %s581 = scalar_lea.vmem %s0, %s580
        %p582 = scmp.lt.s32.totalorder %s32, 1
        %s583 = scalar_select %p582, %s32, 1
        %s584 = scalar_lea.vmem %s1, %s583
        %v586 = vld [vmem:[%s581] sm:$0xff]
        %v587 = vlaneseq
        %v588 = vand.u32 %v587, 127
        %589 = vset.pattern.permute.xlu0 0
        %590 = vperm.xlu0 %589, %v586
        %v591 = vpop.permute.xlu0 %590
        %vm592 = vcmp.eq.s32.totalorder %v588, %v591
        %v593 = vsel %vm592, 1, 0
        %v594 = vcvt.s32.f32 %v593
        %v595 = vld [vmem:[%s2] sm:$0xff]
        %v596 = vld [vmem:[%s2 + $0x8] sm:$0xff]
        %v597 = vld [vmem:[%s2 + $0x10] sm:$0xff]
        %v598 = vld [vmem:[%s2 + $0x18] sm:$0xff]
        %v599 = vld [vmem:[%s2 + $0x20] sm:$0xff]
        %v600 = vld [vmem:[%s2 + $0x28] sm:$0xff]
        %v601 = vld [vmem:[%s2 + $0x30] sm:$0xff]
        %v602 = vld [vmem:[%s2 + $0x38] sm:$0xff]
        %v603 = vld [vmem:[%s2 + $0x40] sm:$0xff]
        %v604 = vld [vmem:[%s2 + $0x48] sm:$0xff]
        %v605 = vld [vmem:[%s2 + $0x50] sm:$0xff]
        %v606 = vld [vmem:[%s2 + $0x58] sm:$0xff]
        %v607 = vld [vmem:[%s2 + $0x60] sm:$0xf]
        %v608 = vld [vmem:[%s3] sm:$0xff]
        %vm609 = vcmask 818176
        %v611 = vsel %vm609, %v594, 0
        %vm613 = vcmask 1043456
        %v615 = vsel %vm613, %v607, 0
        %617 = vmatprep.subr.mxu0 0.0
        %618 = vmatpush1.msra.mxu0 0.0
        %619 = vmatprep.subr.mxu0 0.0
        %620 = vmatpush1.msra.mxu0 0.0
        %621 = vmatprep.subr.mxu0 0.0
        %622 = vmatpush1.msra.mxu0 0.0
        %623 = vmatprep.subr.mxu0 0.0
        %624 = vmatpush1.msra.mxu0 %v615
        %625 = vmatprep.subr.mxu0 0.0
        %626 = vmatpush1.msra.mxu0 %v606
        %627 = vmatprep.subr.mxu0 0.0
        %628 = vmatpush1.msra.mxu0 %v605
        %629 = vmatprep.subr.mxu0 0.0
        %630 = vmatpush1.msra.mxu0 %v604
        %631 = vmatprep.subr.mxu0 0.0
        %632 = vmatpush1.msra.mxu0 %v603
        %633 = vmatprep.subr.mxu0 0.0
        %634 = vmatpush1.msra.mxu0 %v602
        %635 = vmatprep.subr.mxu0 0.0
        %636 = vmatpush1.msra.mxu0 %v601
        %637 = vmatprep.subr.mxu0 0.0
        %638 = vmatpush1.msra.mxu0 %v600
        %639 = vmatprep.subr.mxu0 0.0
        %640 = vmatpush1.msra.mxu0 %v599
        %641 = vmatprep.subr.mxu0 0.0
        %642 = vmatpush1.msra.mxu0 %v598
        %643 = vmatprep.subr.mxu0 0.0
        %644 = vmatpush1.msra.mxu0 %v597
        %645 = vmatprep.subr.mxu0 0.0
        %646 = vmatpush1.msra.mxu0 %v596
        %647 = vmatprep.subr.mxu0 0.0
        %648 = vmatpush1.msra.mxu0 %v595
        %649 = vmatprep.subr.mxu0 0.0
        %650 = vmatpush2.msra.mxu0 0.0
        %651 = vmatprep.subr.mxu0 0.0
        %652 = vmatpush2.msra.mxu0 0.0
        %653 = vmatprep.subr.mxu0 0.0
        %654 = vmatpush2.msra.mxu0 0.0
        %655 = vmatprep.subr.mxu0 0.0
        %656 = vmatpush2.msra.mxu0 0.0
        %657 = vmatprep.subr.mxu0 0.0
        %658 = vmatpush2.msra.mxu0 0.0
        %659 = vmatprep.subr.mxu0 0.0
        %660 = vmatpush2.msra.mxu0 0.0
        %661 = vmatprep.subr.mxu0 0.0
        %662 = vmatpush2.msra.mxu0 0.0
        %663 = vmatprep.subr.mxu0 0.0
        %664 = vmatpush2.msra.mxu0 0.0
        %665 = vmatprep.subr.mxu0 0.0
        %666 = vmatpush2.msra.mxu0 0.0
        %667 = vmatprep.subr.mxu0 0.0
        %668 = vmatpush2.msra.mxu0 0.0
        %669 = vmatprep.subr.mxu0 0.0
        %670 = vmatpush2.msra.mxu0 0.0
        %671 = vmatprep.subr.mxu0 0.0
        %672 = vmatpush2.msra.mxu0 0.0
        %673 = vmatprep.subr.mxu0 0.0
        %674 = vmatpush2.msra.mxu0 0.0
        %675 = vmatprep.subr.mxu0 0.0
        %676 = vmatpush2.msra.mxu0 0.0
        %677 = vmatprep.subr.mxu0 0.0
        %678 = vmatpush2.msra.mxu0 0.0
        %679 = vmatprep.subr.mxu0 0.0
        %680 = vmatpush2.msra.mxu0 0.0
        %681 = vmatprep.mubr.f32.mxu0 0.0
        %682 = vmatmul.mubr.f32.gmra.mxu0 %v611
        %v683 = vpop.f32.mrf.mxu0
        %v684 = vadd.f32 %v608, %v683
        %v685 = vpop.f32.mrf.mxu0
        %686 = vdwg.mxu0
        %v687 = vld [vmem:[%s4] sm:$0x1]
        %v688 = vld [vmem:[%s5] sm:$0x1]
        %vm689 = vcmask 261120
        %v690 = vsel %vm689, %v684, 0.0
        %691 = vadd.xlane.f32.xlu0 %v690
        %v692 = vpop.xlane.xlu0 %691
        %v693 = vrcp.pop 32.0
        %v694 = vmul.f32 %v692, %v693
        %v695 = vsub.f32 %v684, %v694
        %v696 = vmul.f32 %v695, %v695
        %v697 = vsel %vm689, %v696, 0.0
        %698 = vadd.xlane.f32.xlu0 %v697
        %v699 = vpop.xlane.xlu0 %698
        %v700 = vmul.f32 %v699, %v693
        %v701 = vadd.f32 %v700, 1e-12
        %v702 = vrsqrt.pop %v701
        %v703 = vmul.f32 %v695, %v702
        %v705 = vlaneseq
        %v706 = vshrl.u32 %v705, 7
        %v707 = vsub.s32 0, %v706
        %v708 = vrot.slane %v687, %v707
        %v710 = vmul.f32 %v703, %v708
        %v712 = vlaneseq
        %v713 = vshrl.u32 %v712, 7
        %v714 = vsub.s32 0, %v713
        %v715 = vrot.slane %v688, %v714
        %v717 = vadd.f32 %v710, %v715
        %v718 = vld [vmem:[%s584] sm:$0x1]
        %v719 = vpack.c.bf16 %v717, %v717
        %v720 = vld [vmem:[%s6] sm:$0xff]
        %v721 = vld [vmem:[%s6 + $0x8] sm:$0xff]
        %v722 = vld [vmem:[%s6 + $0x10] sm:$0xff]
        %v723 = vld [vmem:[%s6 + $0x18] sm:$0xff]
        %v724 = vpack.c.bf16 %v721, %v720
        %v725 = vpack.c.bf16 %v723, %v722
        %v726 = vld [vmem:[%s7] sm:$0x1]
        %v728 = vlaneseq
        %v729 = vshrl.u32 %v728, 7
        %v730 = vsub.s32 0, %v729
        %v731 = vrot.slane %v726, %v730
        %v734 = vsel %vm689, %v719, 0
        %736 = vmatprep.subr.bf16.mxu0 0
        %737 = vmatpush1.bf16.msra.mxu0 0
        %738 = vmatprep.subr.bf16.mxu0 0
        %739 = vmatpush1.bf16.msra.mxu0 0
        %740 = vmatprep.subr.bf16.mxu0 0
        %741 = vmatpush1.bf16.msra.mxu0 0
        %742 = vmatprep.subr.bf16.mxu0 0
        %743 = vmatpush1.bf16.msra.mxu0 0
        %744 = vmatprep.subr.bf16.mxu0 0
        %745 = vmatpush1.bf16.msra.mxu0 0
        %746 = vmatprep.subr.bf16.mxu0 0
        %747 = vmatpush1.bf16.msra.mxu0 0
        %748 = vmatprep.subr.bf16.mxu0 0
        %749 = vmatpush1.bf16.msra.mxu0 %v725
        %750 = vmatprep.subr.bf16.mxu0 0
        %751 = vmatpush1.bf16.msra.mxu0 %v724
        %752 = vmatprep.subr.bf16.mxu0 0
        %753 = vmatpush2.bf16.msra.mxu0 0
        %754 = vmatprep.subr.bf16.mxu0 0
        %755 = vmatpush2.bf16.msra.mxu0 0
        %756 = vmatprep.subr.bf16.mxu0 0
        %757 = vmatpush2.bf16.msra.mxu0 0
        %758 = vmatprep.subr.bf16.mxu0 0
        %759 = vmatpush2.bf16.msra.mxu0 0
        %760 = vmatprep.subr.bf16.mxu0 0
        %761 = vmatpush2.bf16.msra.mxu0 0
        %762 = vmatprep.subr.bf16.mxu0 0
        %763 = vmatpush2.bf16.msra.mxu0 0
        %764 = vmatprep.subr.bf16.mxu0 0
        %765 = vmatpush2.bf16.msra.mxu0 0
        %766 = vmatprep.subr.bf16.mxu0 0
        %767 = vmatpush2.bf16.msra.mxu0 0
        %768 = vmatprep.mubr.bf16.mxu0 0
        %769 = vmatmul.mubr.bf16.gmra.mxu0 %v734
        %v770 = vpop.f32.mrf.mxu0
        %v771 = vadd.f32 %v731, %v770
        %v772 = vpop.f32.mrf.mxu0
        %v773 = vpop.f32.mrf.mxu0
        %v774 = vpop.f32.mrf.mxu0
        %775 = vdwg.mxu0
        %v776 = vpack.c.bf16 %v771, %v771
        %778 = vrot.lane.b32.xlu0 %v776, 96
        %v779 = vpop.permute.xlu0 %778
        %vm780 = vcmask 130048
        %v782 = vsel %vm780, %v776, 0
        %v785 = vsel %vm780, %v779, 0
        %787 = vmatprep.subr.bf16.mxu0 0
        %788 = vmatpush1.bf16.xpose.msra.mxu0 0
        %789 = vmatprep.subr.bf16.mxu0 0
        %790 = vmatpush1.bf16.xpose.msra.mxu0 0
        %791 = vmatprep.subr.bf16.mxu0 0
        %792 = vmatpush1.bf16.xpose.msra.mxu0 0
        %793 = vmatprep.subr.bf16.mxu0 0
        %794 = vmatpush1.bf16.xpose.msra.mxu0 0
        %795 = vmatprep.subr.bf16.mxu0 0
        %796 = vmatpush1.bf16.xpose.msra.mxu0 0
        %797 = vmatprep.subr.bf16.mxu0 0
        %798 = vmatpush1.bf16.xpose.msra.mxu0 0
        %799 = vmatprep.subr.bf16.mxu0 0
        %800 = vmatpush1.bf16.xpose.msra.mxu0 0
        %801 = vmatprep.subr.bf16.mxu0 0
        %802 = vmatpush1.bf16.xpose.msra.mxu0 %v785
        %803 = vmatprep.subr.bf16.mxu0 0
        %804 = vmatpush2.bf16.xpose.msra.mxu0 0
        %805 = vmatprep.subr.bf16.mxu0 0
        %806 = vmatpush2.bf16.xpose.msra.mxu0 0
        %807 = vmatprep.subr.bf16.mxu0 0
        %808 = vmatpush2.bf16.xpose.msra.mxu0 0
        %809 = vmatprep.subr.bf16.mxu0 0
        %810 = vmatpush2.bf16.xpose.msra.mxu0 0
        %811 = vmatprep.subr.bf16.mxu0 0
        %812 = vmatpush2.bf16.xpose.msra.mxu0 0
        %813 = vmatprep.subr.bf16.mxu0 0
        %814 = vmatpush2.bf16.xpose.msra.mxu0 0
        %815 = vmatprep.subr.bf16.mxu0 0
        %816 = vmatpush2.bf16.xpose.msra.mxu0 0
        %817 = vmatprep.subr.bf16.mxu0 0
        %818 = vmatpush2.bf16.xpose.msra.mxu0 0
        %819 = vmatprep.mubr.bf16.mxu0 0
        %820 = vmatmul.mubr.bf16.gmra.mxu0 %v782
        %v821 = vpop.f32.mrf.mxu0
        %v822 = vadd.f32 0.0, %v821
        %v823 = vpop.f32.mrf.mxu0
        %v824 = vpop.f32.mrf.mxu0
        %v825 = vpop.f32.mrf.mxu0
        %826 = vdwg.mxu0
        %v827 = vmul.f32 %v822, 0.25
        %v829 = vlaneseq
        %v830 = vshrl.u32 %v829, 7
        %v831 = vsub.s32 0, %v830
        %v832 = vrot.slane %v718, %v831
        %v834 = vadd.f32 %v827, %v832
        %vm835 = vcmask 64512
        %v836 = vsel %vm835, %v834, -inf
        %837 = vmax.xlane.f32.xlu0 %v836
        %v838 = vpop.xlane.xlu0 %837
        %v839 = vsub.f32 %v834, %v838
        %v840 = vmul.f32 %v839, 1.442695
        %v841 = vpow.pop %v840
        %v842 = vsel %vm835, %v841, 0.0
        %843 = vadd.xlane.f32.xlu0 %v842
        %v844 = vpop.xlane.xlu0 %843
        %v845 = vrcp.pop %v844
        %v846 = vmul.f32 %v841, %v845
        %v847 = vpack.c.bf16 %v846, %v846
        %848 = vrot.lane.b32.xlu0 %v776, 64
        %v849 = vpop.permute.xlu0 %848
        %v851 = vsel %vm835, %v847, 0
        %v854 = vsel %vm613, %v849, 0
        %856 = vmatprep.subr.bf16.mxu0 0
        %857 = vmatpush1.bf16.msra.mxu0 0
        %858 = vmatprep.subr.bf16.mxu0 0
        %859 = vmatpush1.bf16.msra.mxu0 0
        %860 = vmatprep.subr.bf16.mxu0 0
        %861 = vmatpush1.bf16.msra.mxu0 0
        %862 = vmatprep.subr.bf16.mxu0 0
        %863 = vmatpush1.bf16.msra.mxu0 0
        %864 = vmatprep.subr.bf16.mxu0 0
        %865 = vmatpush1.bf16.msra.mxu0 0
        %866 = vmatprep.subr.bf16.mxu0 0
        %867 = vmatpush1.bf16.msra.mxu0 0
        %868 = vmatprep.subr.bf16.mxu0 0
        %869 = vmatpush1.bf16.msra.mxu0 0
        %870 = vmatprep.subr.bf16.mxu0 0
        %871 = vmatpush1.bf16.msra.mxu0 %v854
        %872 = vmatprep.subr.bf16.mxu0 0
        %873 = vmatpush2.bf16.msra.mxu0 0
        %874 = vmatprep.subr.bf16.mxu0 0
        %875 = vmatpush2.bf16.msra.mxu0 0
        %876 = vmatprep.subr.bf16.mxu0 0
        %877 = vmatpush2.bf16.msra.mxu0 0
        %878 = vmatprep.subr.bf16.mxu0 0
        %879 = vmatpush2.bf16.msra.mxu0 0
        %880 = vmatprep.subr.bf16.mxu0 0
        %881 = vmatpush2.bf16.msra.mxu0 0
        %882 = vmatprep.subr.bf16.mxu0 0
        %883 = vmatpush2.bf16.msra.mxu0 0
        %884 = vmatprep.subr.bf16.mxu0 0
        %885 = vmatpush2.bf16.msra.mxu0 0
        %886 = vmatprep.subr.bf16.mxu0 0
        %887 = vmatpush2.bf16.msra.mxu0 0
        %888 = vmatprep.mubr.bf16.mxu0 0
        %889 = vmatmul.mubr.bf16.gmra.mxu0 %v851
        %v890 = vpop.f32.mrf.mxu0
        %v891 = vadd.f32 0.0, %v890
        %v892 = vpop.f32.mrf.mxu0
        %v893 = vpop.f32.mrf.mxu0
        %v894 = vpop.f32.mrf.mxu0
        %895 = vdwg.mxu0
        %896 = vrot.lane.b32.xlu0 %v776, 112
        %v897 = vpop.permute.xlu0 %896
        %898 = vrot.lane.b32.xlu0 %v776, 80
        %v899 = vpop.permute.xlu0 %898
        %v901 = vsel %vm780, %v897, 0
        %v904 = vsel %vm780, %v899, 0
        %906 = vmatprep.subr.bf16.mxu0 0
        %907 = vmatpush1.bf16.xpose.msra.mxu0 0
        %908 = vmatprep.subr.bf16.mxu0 0
        %909 = vmatpush1.bf16.xpose.msra.mxu0 0
        %910 = vmatprep.subr.bf16.mxu0 0
        %911 = vmatpush1.bf16.xpose.msra.mxu0 0
        %912 = vmatprep.subr.bf16.mxu0 0
        %913 = vmatpush1.bf16.xpose.msra.mxu0 0
        %914 = vmatprep.subr.bf16.mxu0 0
        %915 = vmatpush1.bf16.xpose.msra.mxu0 0
        %916 = vmatprep.subr.bf16.mxu0 0
        %917 = vmatpush1.bf16.xpose.msra.mxu0 0
        %918 = vmatprep.subr.bf16.mxu0 0
        %919 = vmatpush1.bf16.xpose.msra.mxu0 0
        %920 = vmatprep.subr.bf16.mxu0 0
        %921 = vmatpush1.bf16.xpose.msra.mxu0 %v904
        %922 = vmatprep.subr.bf16.mxu0 0
        %923 = vmatpush2.bf16.xpose.msra.mxu0 0
        %924 = vmatprep.subr.bf16.mxu0 0
        %925 = vmatpush2.bf16.xpose.msra.mxu0 0
        %926 = vmatprep.subr.bf16.mxu0 0
        %927 = vmatpush2.bf16.xpose.msra.mxu0 0
        %928 = vmatprep.subr.bf16.mxu0 0
        %929 = vmatpush2.bf16.xpose.msra.mxu0 0
        %930 = vmatprep.subr.bf16.mxu0 0
        %931 = vmatpush2.bf16.xpose.msra.mxu0 0
        %932 = vmatprep.subr.bf16.mxu0 0
        %933 = vmatpush2.bf16.xpose.msra.mxu0 0
        %934 = vmatprep.subr.bf16.mxu0 0
        %935 = vmatpush2.bf16.xpose.msra.mxu0 0
        %936 = vmatprep.subr.bf16.mxu0 0
        %937 = vmatpush2.bf16.xpose.msra.mxu0 0
        %938 = vmatprep.mubr.bf16.mxu0 0
        %939 = vmatmul.mubr.bf16.gmra.mxu0 %v901
        %v940 = vpop.f32.mrf.mxu0
        %v941 = vadd.f32 0.0, %v940
        %v942 = vpop.f32.mrf.mxu0
        %v943 = vpop.f32.mrf.mxu0
        %v944 = vpop.f32.mrf.mxu0
        %945 = vdwg.mxu0
        %v946 = vmul.f32 %v941, 0.25
        %v947 = vadd.f32 %v946, %v832
        %v948 = vsel %vm835, %v947, -inf
        %949 = vmax.xlane.f32.xlu0 %v948
        %v950 = vpop.xlane.xlu0 %949
        %v951 = vsub.f32 %v947, %v950
        %v952 = vmul.f32 %v951, 1.442695
        %v953 = vpow.pop %v952
        %v954 = vsel %vm835, %v953, 0.0
        %955 = vadd.xlane.f32.xlu0 %v954
        %v956 = vpop.xlane.xlu0 %955
        %v957 = vrcp.pop %v956
        %v958 = vmul.f32 %v953, %v957
        %v959 = vpack.c.bf16 %v958, %v958
        %960 = vrot.lane.b32.xlu0 %v776, 48
        %v961 = vpop.permute.xlu0 %960
        %v963 = vsel %vm835, %v959, 0
        %v966 = vsel %vm613, %v961, 0
        %968 = vmatprep.subr.bf16.mxu0 0
        %969 = vmatpush1.bf16.msra.mxu0 0
        %970 = vmatprep.subr.bf16.mxu0 0
        %971 = vmatpush1.bf16.msra.mxu0 0
        %972 = vmatprep.subr.bf16.mxu0 0
        %973 = vmatpush1.bf16.msra.mxu0 0
        %974 = vmatprep.subr.bf16.mxu0 0
        %975 = vmatpush1.bf16.msra.mxu0 0
        %976 = vmatprep.subr.bf16.mxu0 0
        %977 = vmatpush1.bf16.msra.mxu0 0
        %978 = vmatprep.subr.bf16.mxu0 0
        %979 = vmatpush1.bf16.msra.mxu0 0
        %980 = vmatprep.subr.bf16.mxu0 0
        %981 = vmatpush1.bf16.msra.mxu0 0
        %982 = vmatprep.subr.bf16.mxu0 0
        %983 = vmatpush1.bf16.msra.mxu0 %v966
        %984 = vmatprep.subr.bf16.mxu0 0
        %985 = vmatpush2.bf16.msra.mxu0 0
        %986 = vmatprep.subr.bf16.mxu0 0
        %987 = vmatpush2.bf16.msra.mxu0 0
        %988 = vmatprep.subr.bf16.mxu0 0
        %989 = vmatpush2.bf16.msra.mxu0 0
        %990 = vmatprep.subr.bf16.mxu0 0
        %991 = vmatpush2.bf16.msra.mxu0 0
        %992 = vmatprep.subr.bf16.mxu0 0
        %993 = vmatpush2.bf16.msra.mxu0 0
        %994 = vmatprep.subr.bf16.mxu0 0
        %995 = vmatpush2.bf16.msra.mxu0 0
        %996 = vmatprep.subr.bf16.mxu0 0
        %997 = vmatpush2.bf16.msra.mxu0 0
        %998 = vmatprep.subr.bf16.mxu0 0
        %999 = vmatpush2.bf16.msra.mxu0 0
        %1000 = vmatprep.mubr.bf16.mxu0 0
        %1001 = vmatmul.mubr.bf16.gmra.mxu0 %v963
        %v1002 = vpop.f32.mrf.mxu0
        %v1003 = vadd.f32 0.0, %v1002
        %v1004 = vpop.f32.mrf.mxu0
        %v1005 = vpop.f32.mrf.mxu0
        %v1006 = vpop.f32.mrf.mxu0
        %1007 = vdwg.mxu0
        %1009 = vrot.lane.b32.xlu0 %v1003, 16
        %v1010 = vpop.permute.xlu0 %1009
        %v1012 = vsel %vm780, %v891, %v1010
        %v1013 = vpack.c.bf16 %v1012, %v1012
        %v1014 = vld [vmem:[%s8] sm:$0xff]
        %v1015 = vld [vmem:[%s8 + $0x8] sm:$0xff]
        %v1016 = vld [vmem:[%s8 + $0x10] sm:$0xff]
        %v1017 = vld [vmem:[%s8 + $0x18] sm:$0xff]
        %v1018 = vpack.c.bf16 %v1015, %v1014
        %v1019 = vpack.c.bf16 %v1017, %v1016
        %v1020 = vld [vmem:[%s9] sm:$0x1]
        %v1022 = vlaneseq
        %v1023 = vshrl.u32 %v1022, 7
        %v1024 = vsub.s32 0, %v1023
        %v1025 = vrot.slane %v1020, %v1024
        %v1028 = vsel %vm689, %v1013, 0
        %1030 = vmatprep.subr.bf16.mxu0 0
        %1031 = vmatpush1.bf16.msra.mxu0 0
        %1032 = vmatprep.subr.bf16.mxu0 0
        %1033 = vmatpush1.bf16.msra.mxu0 0
        %1034 = vmatprep.subr.bf16.mxu0 0
        %1035 = vmatpush1.bf16.msra.mxu0 0
        %1036 = vmatprep.subr.bf16.mxu0 0
        %1037 = vmatpush1.bf16.msra.mxu0 0
        %1038 = vmatprep.subr.bf16.mxu0 0
        %1039 = vmatpush1.bf16.msra.mxu0 0
        %1040 = vmatprep.subr.bf16.mxu0 0
        %1041 = vmatpush1.bf16.msra.mxu0 0
        %1042 = vmatprep.subr.bf16.mxu0 0
        %1043 = vmatpush1.bf16.msra.mxu0 %v1019
        %1044 = vmatprep.subr.bf16.mxu0 0
        %1045 = vmatpush1.bf16.msra.mxu0 %v1018
        %1046 = vmatprep.subr.bf16.mxu0 0
        %1047 = vmatpush2.bf16.msra.mxu0 0
        %1048 = vmatprep.subr.bf16.mxu0 0
        %1049 = vmatpush2.bf16.msra.mxu0 0
        %1050 = vmatprep.subr.bf16.mxu0 0
        %1051 = vmatpush2.bf16.msra.mxu0 0
        %1052 = vmatprep.subr.bf16.mxu0 0
        %1053 = vmatpush2.bf16.msra.mxu0 0
        %1054 = vmatprep.subr.bf16.mxu0 0
        %1055 = vmatpush2.bf16.msra.mxu0 0
        %1056 = vmatprep.subr.bf16.mxu0 0
        %1057 = vmatpush2.bf16.msra.mxu0 0
        %1058 = vmatprep.subr.bf16.mxu0 0
        %1059 = vmatpush2.bf16.msra.mxu0 0
        %1060 = vmatprep.subr.bf16.mxu0 0
        %1061 = vmatpush2.bf16.msra.mxu0 0
        %1062 = vmatprep.mubr.bf16.mxu0 0
        %1063 = vmatmul.mubr.bf16.gmra.mxu0 %v1028
        %v1064 = vpop.f32.mrf.mxu0
        %v1065 = vadd.f32 %v1025, %v1064
        %v1066 = vpop.f32.mrf.mxu0
        %v1067 = vpop.f32.mrf.mxu0
        %v1068 = vpop.f32.mrf.mxu0
        %1069 = vdwg.mxu0
        %v1070 = vadd.f32 %v1065, %v717
        %v1071 = vld [vmem:[%s14] sm:$0x1]
        %v1072 = vld [vmem:[%s15] sm:$0x1]
        %v1073 = vsel %vm689, %v1070, 0.0
        %1074 = vadd.xlane.f32.xlu0 %v1073
        %v1075 = vpop.xlane.xlu0 %1074
        %v1076 = vmul.f32 %v1075, %v693
        %v1077 = vsub.f32 %v1070, %v1076
        %v1078 = vmul.f32 %v1077, %v1077
        %v1079 = vsel %vm689, %v1078, 0.0
        %1080 = vadd.xlane.f32.xlu0 %v1079
        %v1081 = vpop.xlane.xlu0 %1080
        %v1082 = vmul.f32 %v1081, %v693
        %v1083 = vadd.f32 %v1082, 1e-12
        %v1084 = vrsqrt.pop %v1083
        %v1085 = vmul.f32 %v1077, %v1084
        %v1087 = vlaneseq
        %v1088 = vshrl.u32 %v1087, 7
        %v1089 = vsub.s32 0, %v1088
        %v1090 = vrot.slane %v1071, %v1089
        %v1092 = vmul.f32 %v1085, %v1090
        %v1094 = vlaneseq
        %v1095 = vshrl.u32 %v1094, 7
        %v1096 = vsub.s32 0, %v1095
        %v1097 = vrot.slane %v1072, %v1096
        %v1099 = vadd.f32 %v1092, %v1097
        %v1100 = vpack.c.bf16 %v1099, %v1099
        %v1101 = vld [vmem:[%s10] sm:$0xff]
        %v1102 = vld [vmem:[%s10 + $0x8] sm:$0xff]
        %v1103 = vld [vmem:[%s10 + $0x10] sm:$0xff]
        %v1104 = vld [vmem:[%s10 + $0x18] sm:$0xff]
        %v1105 = vpack.c.bf16 %v1102, %v1101
        %v1106 = vpack.c.bf16 %v1104, %v1103
        %v1107 = vld [vmem:[%s11] sm:$0x1]
        %v1109 = vlaneseq
        %v1110 = vshrl.u32 %v1109, 7
        %v1111 = vsub.s32 0, %v1110
        %v1112 = vrot.slane %v1107, %v1111
        %v1115 = vsel %vm689, %v1100, 0
        %1117 = vmatprep.subr.bf16.mxu0 0
        %1118 = vmatpush1.bf16.msra.mxu0 0
        %1119 = vmatprep.subr.bf16.mxu0 0
        %1120 = vmatpush1.bf16.msra.mxu0 0
        %1121 = vmatprep.subr.bf16.mxu0 0
        %1122 = vmatpush1.bf16.msra.mxu0 0
        %1123 = vmatprep.subr.bf16.mxu0 0
        %1124 = vmatpush1.bf16.msra.mxu0 0
        %1125 = vmatprep.subr.bf16.mxu0 0
        %1126 = vmatpush1.bf16.msra.mxu0 0
        %1127 = vmatprep.subr.bf16.mxu0 0
        %1128 = vmatpush1.bf16.msra.mxu0 0
        %1129 = vmatprep.subr.bf16.mxu0 0
        %1130 = vmatpush1.bf16.msra.mxu0 %v1106
        %1131 = vmatprep.subr.bf16.mxu0 0
        %1132 = vmatpush1.bf16.msra.mxu0 %v1105
        %1133 = vmatprep.subr.bf16.mxu0 0
        %1134 = vmatpush2.bf16.msra.mxu0 0
        %1135 = vmatprep.subr.bf16.mxu0 0
        %1136 = vmatpush2.bf16.msra.mxu0 0
        %1137 = vmatprep.subr.bf16.mxu0 0
        %1138 = vmatpush2.bf16.msra.mxu0 0
        %1139 = vmatprep.subr.bf16.mxu0 0
        %1140 = vmatpush2.bf16.msra.mxu0 0
        %1141 = vmatprep.subr.bf16.mxu0 0
        %1142 = vmatpush2.bf16.msra.mxu0 0
        %1143 = vmatprep.subr.bf16.mxu0 0
        %1144 = vmatpush2.bf16.msra.mxu0 0
        %1145 = vmatprep.subr.bf16.mxu0 0
        %1146 = vmatpush2.bf16.msra.mxu0 0
        %1147 = vmatprep.subr.bf16.mxu0 0
        %1148 = vmatpush2.bf16.msra.mxu0 0
        %1149 = vmatprep.mubr.bf16.mxu0 0
        %1150 = vmatmul.mubr.bf16.gmra.mxu0 %v1115
        %v1151 = vpop.f32.mrf.mxu0
        %v1152 = vadd.f32 %v1112, %v1151
        %v1153 = vpop.f32.mrf.mxu0
        %v1154 = vpop.f32.mrf.mxu0
        %v1155 = vpop.f32.mrf.mxu0
        %1156 = vdwg.mxu0
        %v1157 = vmul.f32 %v1152, %v1152
        %v1158 = vmul.f32 %v1152, %v1157
        %v1159 = vmul.f32 %v1158, 0.044715
        %v1160 = vadd.f32 %v1152, %v1159
        %v1161 = vmul.f32 %v1160, 0.7978846
        %v1162 = vtanh.pop %v1161
        %v1163 = vadd.f32 %v1162, 1.0
        %v1164 = vmul.f32 %v1163, 0.5
        %v1165 = vmul.f32 %v1152, %v1164
        %v1166 = vpack.c.bf16 %v1165, %v1165
        %v1167 = vld [vmem:[%s12] sm:$0xff]
        %v1168 = vld [vmem:[%s12 + $0x8] sm:$0xff]
        %v1169 = vld [vmem:[%s12 + $0x10] sm:$0xff]
        %v1170 = vld [vmem:[%s12 + $0x18] sm:$0xff]
        %v1171 = vld [vmem:[%s12 + $0x20] sm:$0xff]
        %v1172 = vld [vmem:[%s12 + $0x28] sm:$0xff]
        %v1173 = vld [vmem:[%s12 + $0x30] sm:$0xff]
        %v1174 = vld [vmem:[%s12 + $0x38] sm:$0xff]
        %v1175 = vpack.c.bf16 %v1168, %v1167
        %v1176 = vpack.c.bf16 %v1170, %v1169
        %v1177 = vpack.c.bf16 %v1172, %v1171
        %v1178 = vpack.c.bf16 %v1174, %v1173
        %v1179 = vld [vmem:[%s13] sm:$0x1]
        %v1181 = vlaneseq
        %v1182 = vshrl.u32 %v1181, 7
        %v1183 = vsub.s32 0, %v1182
        %v1184 = vrot.slane %v1179, %v1183
        %vm1186 = vcmask 523264
        %v1188 = vsel %vm1186, %v1166, 0
        %1190 = vmatprep.subr.bf16.mxu0 0
        %1191 = vmatpush1.bf16.msra.mxu0 0
        %1192 = vmatprep.subr.bf16.mxu0 0
        %1193 = vmatpush1.bf16.msra.mxu0 0
        %1194 = vmatprep.subr.bf16.mxu0 0
        %1195 = vmatpush1.bf16.msra.mxu0 0
        %1196 = vmatprep.subr.bf16.mxu0 0
        %1197 = vmatpush1.bf16.msra.mxu0 0
        %1198 = vmatprep.subr.bf16.mxu0 0
        %1199 = vmatpush1.bf16.msra.mxu0 %v1178
        %1200 = vmatprep.subr.bf16.mxu0 0
        %1201 = vmatpush1.bf16.msra.mxu0 %v1177
        %1202 = vmatprep.subr.bf16.mxu0 0
        %1203 = vmatpush1.bf16.msra.mxu0 %v1176
        %1204 = vmatprep.subr.bf16.mxu0 0
        %1205 = vmatpush1.bf16.msra.mxu0 %v1175
        %1206 = vmatprep.subr.bf16.mxu0 0
        %1207 = vmatpush2.bf16.msra.mxu0 0
        %1208 = vmatprep.subr.bf16.mxu0 0
        %1209 = vmatpush2.bf16.msra.mxu0 0
        %1210 = vmatprep.subr.bf16.mxu0 0
        %1211 = vmatpush2.bf16.msra.mxu0 0
        %1212 = vmatprep.subr.bf16.mxu0 0
        %1213 = vmatpush2.bf16.msra.mxu0 0
        %1214 = vmatprep.subr.bf16.mxu0 0
        %1215 = vmatpush2.bf16.msra.mxu0 0
        %1216 = vmatprep.subr.bf16.mxu0 0
        %1217 = vmatpush2.bf16.msra.mxu0 0
        %1218 = vmatprep.subr.bf16.mxu0 0
        %1219 = vmatpush2.bf16.msra.mxu0 0
        %1220 = vmatprep.subr.bf16.mxu0 0
        %1221 = vmatpush2.bf16.msra.mxu0 0
        %1222 = vmatprep.mubr.bf16.mxu0 0
        %1223 = vmatmul.mubr.bf16.gmra.mxu0 %v1188
        %v1224 = vpop.f32.mrf.mxu0
        %v1225 = vadd.f32 %v1184, %v1224
        %v1226 = vpop.f32.mrf.mxu0
        %v1227 = vpop.f32.mrf.mxu0
        %v1228 = vpop.f32.mrf.mxu0
        %1229 = vdwg.mxu0
        %v1230 = vadd.f32 %v1225, %v1099
        %v1231 = vld [vmem:[%s16] sm:$0x1]
        %v1232 = vld [vmem:[%s17] sm:$0x1]
        %v1233 = vsel %vm689, %v1230, 0.0
        %1234 = vadd.xlane.f32.xlu0 %v1233
        %v1235 = vpop.xlane.xlu0 %1234
        %v1236 = vmul.f32 %v1235, %v693
        %v1237 = vsub.f32 %v1230, %v1236
        %v1238 = vmul.f32 %v1237, %v1237
        %v1239 = vsel %vm689, %v1238, 0.0
        %1240 = vadd.xlane.f32.xlu0 %v1239
        %v1241 = vpop.xlane.xlu0 %1240
        %v1242 = vmul.f32 %v1241, %v693
        %v1243 = vadd.f32 %v1242, 1e-12
        %v1244 = vrsqrt.pop %v1243
        %v1245 = vmul.f32 %v1237, %v1244
        %v1247 = vlaneseq
        %v1248 = vshrl.u32 %v1247, 7
        %v1249 = vsub.s32 0, %v1248
        %v1250 = vrot.slane %v1231, %v1249
        %v1252 = vmul.f32 %v1245, %v1250
        %v1254 = vlaneseq
        %v1255 = vshrl.u32 %v1254, 7
        %v1256 = vsub.s32 0, %v1255
        %v1257 = vrot.slane %v1232, %v1256
        %v1259 = vadd.f32 %v1252, %v1257
        %v1260 = vpack.c.bf16 %v1259, %v1259
        %s1261 = scalar_lea.vmem %s6, 32
        %v1262 = vld [vmem:[%s1261] sm:$0xff]
        %v1263 = vld [vmem:[%s1261 + $0x8] sm:$0xff]
        %v1264 = vld [vmem:[%s1261 + $0x10] sm:$0xff]
        %v1265 = vld [vmem:[%s1261 + $0x18] sm:$0xff]
        %v1266 = vpack.c.bf16 %v1263, %v1262
        %v1267 = vpack.c.bf16 %v1265, %v1264
        %s1268 = scalar_lea.vmem %s7, 1
        %v1269 = vld [vmem:[%s1268] sm:$0x1]
        %v1271 = vlaneseq
        %v1272 = vshrl.u32 %v1271, 7
        %v1273 = vsub.s32 0, %v1272
        %v1274 = vrot.slane %v1269, %v1273
        %v1277 = vsel %vm689, %v1260, 0
        %1279 = vmatprep.subr.bf16.mxu0 0
        %1280 = vmatpush1.bf16.msra.mxu0 0
        %1281 = vmatprep.subr.bf16.mxu0 0
        %1282 = vmatpush1.bf16.msra.mxu0 0
        %1283 = vmatprep.subr.bf16.mxu0 0
        %1284 = vmatpush1.bf16.msra.mxu0 0
        %1285 = vmatprep.subr.bf16.mxu0 0
        %1286 = vmatpush1.bf16.msra.mxu0 0
        %1287 = vmatprep.subr.bf16.mxu0 0
        %1288 = vmatpush1.bf16.msra.mxu0 0
        %1289 = vmatprep.subr.bf16.mxu0 0
        %1290 = vmatpush1.bf16.msra.mxu0 0
        %1291 = vmatprep.subr.bf16.mxu0 0
        %1292 = vmatpush1.bf16.msra.mxu0 %v1267
        %1293 = vmatprep.subr.bf16.mxu0 0
        %1294 = vmatpush1.bf16.msra.mxu0 %v1266
        %1295 = vmatprep.subr.bf16.mxu0 0
        %1296 = vmatpush2.bf16.msra.mxu0 0
        %1297 = vmatprep.subr.bf16.mxu0 0
        %1298 = vmatpush2.bf16.msra.mxu0 0
        %1299 = vmatprep.subr.bf16.mxu0 0
        %1300 = vmatpush2.bf16.msra.mxu0 0
        %1301 = vmatprep.subr.bf16.mxu0 0
        %1302 = vmatpush2.bf16.msra.mxu0 0
        %1303 = vmatprep.subr.bf16.mxu0 0
        %1304 = vmatpush2.bf16.msra.mxu0 0
        %1305 = vmatprep.subr.bf16.mxu0 0
        %1306 = vmatpush2.bf16.msra.mxu0 0
        %1307 = vmatprep.subr.bf16.mxu0 0
        %1308 = vmatpush2.bf16.msra.mxu0 0
        %1309 = vmatprep.subr.bf16.mxu0 0
        %1310 = vmatpush2.bf16.msra.mxu0 0
        %1311 = vmatprep.mubr.bf16.mxu0 0
        %1312 = vmatmul.mubr.bf16.gmra.mxu0 %v1277
        %v1313 = vpop.f32.mrf.mxu0
        %v1314 = vadd.f32 %v1274, %v1313
        %v1315 = vpop.f32.mrf.mxu0
        %v1316 = vpop.f32.mrf.mxu0
        %v1317 = vpop.f32.mrf.mxu0
        %1318 = vdwg.mxu0
        %v1319 = vpack.c.bf16 %v1314, %v1314
        %1321 = vrot.lane.b32.xlu0 %v1319, 96
        %v1322 = vpop.permute.xlu0 %1321
        %v1324 = vsel %vm780, %v1319, 0
        %v1327 = vsel %vm780, %v1322, 0
        %1329 = vmatprep.subr.bf16.mxu0 0
        %1330 = vmatpush1.bf16.xpose.msra.mxu0 0
        %1331 = vmatprep.subr.bf16.mxu0 0
        %1332 = vmatpush1.bf16.xpose.msra.mxu0 0
        %1333 = vmatprep.subr.bf16.mxu0 0
        %1334 = vmatpush1.bf16.xpose.msra.mxu0 0
        %1335 = vmatprep.subr.bf16.mxu0 0
        %1336 = vmatpush1.bf16.xpose.msra.mxu0 0
        %1337 = vmatprep.subr.bf16.mxu0 0
        %1338 = vmatpush1.bf16.xpose.msra.mxu0 0
        %1339 = vmatprep.subr.bf16.mxu0 0
        %1340 = vmatpush1.bf16.xpose.msra.mxu0 0
        %1341 = vmatprep.subr.bf16.mxu0 0
        %1342 = vmatpush1.bf16.xpose.msra.mxu0 0
        %1343 = vmatprep.subr.bf16.mxu0 0
        %1344 = vmatpush1.bf16.xpose.msra.mxu0 %v1327
        %1345 = vmatprep.subr.bf16.mxu0 0
        %1346 = vmatpush2.bf16.xpose.msra.mxu0 0
        %1347 = vmatprep.subr.bf16.mxu0 0
        %1348 = vmatpush2.bf16.xpose.msra.mxu0 0
        %1349 = vmatprep.subr.bf16.mxu0 0
        %1350 = vmatpush2.bf16.xpose.msra.mxu0 0
        %1351 = vmatprep.subr.bf16.mxu0 0
        %1352 = vmatpush2.bf16.xpose.msra.mxu0 0
        %1353 = vmatprep.subr.bf16.mxu0 0
        %1354 = vmatpush2.bf16.xpose.msra.mxu0 0
        %1355 = vmatprep.subr.bf16.mxu0 0
        %1356 = vmatpush2.bf16.xpose.msra.mxu0 0
        %1357 = vmatprep.subr.bf16.mxu0 0
        %1358 = vmatpush2.bf16.xpose.msra.mxu0 0
        %1359 = vmatprep.subr.bf16.mxu0 0
        %1360 = vmatpush2.bf16.xpose.msra.mxu0 0
        %1361 = vmatprep.mubr.bf16.mxu0 0
        %1362 = vmatmul.mubr.bf16.gmra.mxu0 %v1324
        %v1363 = vpop.f32.mrf.mxu0
        %v1364 = vadd.f32 0.0, %v1363
        %v1365 = vpop.f32.mrf.mxu0
        %v1366 = vpop.f32.mrf.mxu0
        %v1367 = vpop.f32.mrf.mxu0
        %1368 = vdwg.mxu0
        %v1369 = vmul.f32 %v1364, 0.25
        %v1370 = vadd.f32 %v1369, %v832
        %v1371 = vsel %vm835, %v1370, -inf
        %1372 = vmax.xlane.f32.xlu0 %v1371
        %v1373 = vpop.xlane.xlu0 %1372
        %v1374 = vsub.f32 %v1370, %v1373
        %v1375 = vmul.f32 %v1374, 1.442695
        %v1376 = vpow.pop %v1375
        %v1377 = vsel %vm835, %v1376, 0.0
        %1378 = vadd.xlane.f32.xlu0 %v1377
        %v1379 = vpop.xlane.xlu0 %1378
        %v1380 = vrcp.pop %v1379
        %v1381 = vmul.f32 %v1376, %v1380
        %v1382 = vpack.c.bf16 %v1381, %v1381
        %1383 = vrot.lane.b32.xlu0 %v1319, 64
        %v1384 = vpop.permute.xlu0 %1383
        %v1386 = vsel %vm835, %v1382, 0
        %v1389 = vsel %vm613, %v1384, 0
        %1391 = vmatprep.subr.bf16.mxu0 0
        %1392 = vmatpush1.bf16.msra.mxu0 0
        %1393 = vmatprep.subr.bf16.mxu0 0
        %1394 = vmatpush1.bf16.msra.mxu0 0
        %1395 = vmatprep.subr.bf16.mxu0 0
        %1396 = vmatpush1.bf16.msra.mxu0 0
        %1397 = vmatprep.subr.bf16.mxu0 0
        %1398 = vmatpush1.bf16.msra.mxu0 0
        %1399 = vmatprep.subr.bf16.mxu0 0
        %1400 = vmatpush1.bf16.msra.mxu0 0
        %1401 = vmatprep.subr.bf16.mxu0 0
        %1402 = vmatpush1.bf16.msra.mxu0 0
        %1403 = vmatprep.subr.bf16.mxu0 0
        %1404 = vmatpush1.bf16.msra.mxu0 0
        %1405 = vmatprep.subr.bf16.mxu0 0
        %1406 = vmatpush1.bf16.msra.mxu0 %v1389
        %1407 = vmatprep.subr.bf16.mxu0 0
        %1408 = vmatpush2.bf16.msra.mxu0 0
        %1409 = vmatprep.subr.bf16.mxu0 0
        %1410 = vmatpush2.bf16.msra.mxu0 0
        %1411 = vmatprep.subr.bf16.mxu0 0
        %1412 = vmatpush2.bf16.msra.mxu0 0
        %1413 = vmatprep.subr.bf16.mxu0 0
        %1414 = vmatpush2.bf16.msra.mxu0 0
        %1415 = vmatprep.subr.bf16.mxu0 0
        %1416 = vmatpush2.bf16.msra.mxu0 0
        %1417 = vmatprep.subr.bf16.mxu0 0
        %1418 = vmatpush2.bf16.msra.mxu0 0
        %1419 = vmatprep.subr.bf16.mxu0 0
        %1420 = vmatpush2.bf16.msra.mxu0 0
        %1421 = vmatprep.subr.bf16.mxu0 0
        %1422 = vmatpush2.bf16.msra.mxu0 0
        %1423 = vmatprep.mubr.bf16.mxu0 0
        %1424 = vmatmul.mubr.bf16.gmra.mxu0 %v1386
        %v1425 = vpop.f32.mrf.mxu0
        %v1426 = vadd.f32 0.0, %v1425
        %v1427 = vpop.f32.mrf.mxu0
        %v1428 = vpop.f32.mrf.mxu0
        %v1429 = vpop.f32.mrf.mxu0
        %1430 = vdwg.mxu0
        %1431 = vrot.lane.b32.xlu0 %v1319, 112
        %v1432 = vpop.permute.xlu0 %1431
        %1433 = vrot.lane.b32.xlu0 %v1319, 80
        %v1434 = vpop.permute.xlu0 %1433
        %v1436 = vsel %vm780, %v1432, 0
        %v1439 = vsel %vm780, %v1434, 0
        %1441 = vmatprep.subr.bf16.mxu0 0
        %1442 = vmatpush1.bf16.xpose.msra.mxu0 0
        %1443 = vmatprep.subr.bf16.mxu0 0
        %1444 = vmatpush1.bf16.xpose.msra.mxu0 0
        %1445 = vmatprep.subr.bf16.mxu0 0
        %1446 = vmatpush1.bf16.xpose.msra.mxu0 0
        %1447 = vmatprep.subr.bf16.mxu0 0
        %1448 = vmatpush1.bf16.xpose.msra.mxu0 0
        %1449 = vmatprep.subr.bf16.mxu0 0
        %1450 = vmatpush1.bf16.xpose.msra.mxu0 0
        %1451 = vmatprep.subr.bf16.mxu0 0
        %1452 = vmatpush1.bf16.xpose.msra.mxu0 0
        %1453 = vmatprep.subr.bf16.mxu0 0
        %1454 = vmatpush1.bf16.xpose.msra.mxu0 0
        %1455 = vmatprep.subr.bf16.mxu0 0
        %1456 = vmatpush1.bf16.xpose.msra.mxu0 %v1439
        %1457 = vmatprep.subr.bf16.mxu0 0
        %1458 = vmatpush2.bf16.xpose.msra.mxu0 0
        %1459 = vmatprep.subr.bf16.mxu0 0
        %1460 = vmatpush2.bf16.xpose.msra.mxu0 0
        %1461 = vmatprep.subr.bf16.mxu0 0
        %1462 = vmatpush2.bf16.xpose.msra.mxu0 0
        %1463 = vmatprep.subr.bf16.mxu0 0
        %1464 = vmatpush2.bf16.xpose.msra.mxu0 0
        %1465 = vmatprep.subr.bf16.mxu0 0
        %1466 = vmatpush2.bf16.xpose.msra.mxu0 0
        %1467 = vmatprep.subr.bf16.mxu0 0
        %1468 = vmatpush2.bf16.xpose.msra.mxu0 0
        %1469 = vmatprep.subr.bf16.mxu0 0
        %1470 = vmatpush2.bf16.xpose.msra.mxu0 0
        %1471 = vmatprep.subr.bf16.mxu0 0
        %1472 = vmatpush2.bf16.xpose.msra.mxu0 0
        %1473 = vmatprep.mubr.bf16.mxu0 0
        %1474 = vmatmul.mubr.bf16.gmra.mxu0 %v1436
        %v1475 = vpop.f32.mrf.mxu0
        %v1476 = vadd.f32 0.0, %v1475
        %v1477 = vpop.f32.mrf.mxu0
        %v1478 = vpop.f32.mrf.mxu0
        %v1479 = vpop.f32.mrf.mxu0
        %1480 = vdwg.mxu0
        %v1481 = vmul.f32 %v1476, 0.25
        %v1482 = vadd.f32 %v1481, %v832
        %v1483 = vsel %vm835, %v1482, -inf
        %1484 = vmax.xlane.f32.xlu0 %v1483
        %v1485 = vpop.xlane.xlu0 %1484
        %v1486 = vsub.f32 %v1482, %v1485
        %v1487 = vmul.f32 %v1486, 1.442695
        %v1488 = vpow.pop %v1487
        %v1489 = vsel %vm835, %v1488, 0.0
        %1490 = vadd.xlane.f32.xlu0 %v1489
        %v1491 = vpop.xlane.xlu0 %1490
        %v1492 = vrcp.pop %v1491
        %v1493 = vmul.f32 %v1488, %v1492
        %v1494 = vpack.c.bf16 %v1493, %v1493
        %1495 = vrot.lane.b32.xlu0 %v1319, 48
        %v1496 = vpop.permute.xlu0 %1495
        %v1498 = vsel %vm835, %v1494, 0
        %v1501 = vsel %vm613, %v1496, 0
        %1503 = vmatprep.subr.bf16.mxu0 0
        %1504 = vmatpush1.bf16.msra.mxu0 0
        %1505 = vmatprep.subr.bf16.mxu0 0
        %1506 = vmatpush1.bf16.msra.mxu0 0
        %1507 = vmatprep.subr.bf16.mxu0 0
        %1508 = vmatpush1.bf16.msra.mxu0 0
        %1509 = vmatprep.subr.bf16.mxu0 0
        %1510 = vmatpush1.bf16.msra.mxu0 0
        %1511 = vmatprep.subr.bf16.mxu0 0
        %1512 = vmatpush1.bf16.msra.mxu0 0
        %1513 = vmatprep.subr.bf16.mxu0 0
        %1514 = vmatpush1.bf16.msra.mxu0 0
        %1515 = vmatprep.subr.bf16.mxu0 0
        %1516 = vmatpush1.bf16.msra.mxu0 0
        %1517 = vmatprep.subr.bf16.mxu0 0
        %1518 = vmatpush1.bf16.msra.mxu0 %v1501
        %1519 = vmatprep.subr.bf16.mxu0 0
        %1520 = vmatpush2.bf16.msra.mxu0 0
        %1521 = vmatprep.subr.bf16.mxu0 0
        %1522 = vmatpush2.bf16.msra.mxu0 0
        %1523 = vmatprep.subr.bf16.mxu0 0
        %1524 = vmatpush2.bf16.msra.mxu0 0
        %1525 = vmatprep.subr.bf16.mxu0 0
        %1526 = vmatpush2.bf16.msra.mxu0 0
        %1527 = vmatprep.subr.bf16.mxu0 0
        %1528 = vmatpush2.bf16.msra.mxu0 0
        %1529 = vmatprep.subr.bf16.mxu0 0
        %1530 = vmatpush2.bf16.msra.mxu0 0
        %1531 = vmatprep.subr.bf16.mxu0 0
        %1532 = vmatpush2.bf16.msra.mxu0 0
        %1533 = vmatprep.subr.bf16.mxu0 0
        %1534 = vmatpush2.bf16.msra.mxu0 0
        %1535 = vmatprep.mubr.bf16.mxu0 0
        %1536 = vmatmul.mubr.bf16.gmra.mxu0 %v1498
        %v1537 = vpop.f32.mrf.mxu0
        %v1538 = vadd.f32 0.0, %v1537
        %v1539 = vpop.f32.mrf.mxu0
        %v1540 = vpop.f32.mrf.mxu0
        %v1541 = vpop.f32.mrf.mxu0
        %1542 = vdwg.mxu0
        %1544 = vrot.lane.b32.xlu0 %v1538, 16
        %v1545 = vpop.permute.xlu0 %1544
        %v1547 = vsel %vm780, %v1426, %v1545
        %v1548 = vpack.c.bf16 %v1547, %v1547
        %s1549 = scalar_lea.vmem %s8, 32
        %v1550 = vld [vmem:[%s1549] sm:$0xff]
        %v1551 = vld [vmem:[%s1549 + $0x8] sm:$0xff]
        %v1552 = vld [vmem:[%s1549 + $0x10] sm:$0xff]
        %v1553 = vld [vmem:[%s1549 + $0x18] sm:$0xff]
        %v1554 = vpack.c.bf16 %v1551, %v1550
        %v1555 = vpack.c.bf16 %v1553, %v1552
        %s1556 = scalar_lea.vmem %s9, 1
        %v1557 = vld [vmem:[%s1556] sm:$0x1]
        %v1559 = vlaneseq
        %v1560 = vshrl.u32 %v1559, 7
        %v1561 = vsub.s32 0, %v1560
        %v1562 = vrot.slane %v1557, %v1561
        %v1565 = vsel %vm689, %v1548, 0
        %1567 = vmatprep.subr.bf16.mxu0 0
        %1568 = vmatpush1.bf16.msra.mxu0 0
        %1569 = vmatprep.subr.bf16.mxu0 0
        %1570 = vmatpush1.bf16.msra.mxu0 0
        %1571 = vmatprep.subr.bf16.mxu0 0
        %1572 = vmatpush1.bf16.msra.mxu0 0
        %1573 = vmatprep.subr.bf16.mxu0 0
        %1574 = vmatpush1.bf16.msra.mxu0 0
        %1575 = vmatprep.subr.bf16.mxu0 0
        %1576 = vmatpush1.bf16.msra.mxu0 0
        %1577 = vmatprep.subr.bf16.mxu0 0
        %1578 = vmatpush1.bf16.msra.mxu0 0
        %1579 = vmatprep.subr.bf16.mxu0 0
        %1580 = vmatpush1.bf16.msra.mxu0 %v1555
        %1581 = vmatprep.subr.bf16.mxu0 0
        %1582 = vmatpush1.bf16.msra.mxu0 %v1554
        %1583 = vmatprep.subr.bf16.mxu0 0
        %1584 = vmatpush2.bf16.msra.mxu0 0
        %1585 = vmatprep.subr.bf16.mxu0 0
        %1586 = vmatpush2.bf16.msra.mxu0 0
        %1587 = vmatprep.subr.bf16.mxu0 0
        %1588 = vmatpush2.bf16.msra.mxu0 0
        %1589 = vmatprep.subr.bf16.mxu0 0
        %1590 = vmatpush2.bf16.msra.mxu0 0
        %1591 = vmatprep.subr.bf16.mxu0 0
        %1592 = vmatpush2.bf16.msra.mxu0 0
        %1593 = vmatprep.subr.bf16.mxu0 0
        %1594 = vmatpush2.bf16.msra.mxu0 0
        %1595 = vmatprep.subr.bf16.mxu0 0
        %1596 = vmatpush2.bf16.msra.mxu0 0
        %1597 = vmatprep.subr.bf16.mxu0 0
        %1598 = vmatpush2.bf16.msra.mxu0 0
        %1599 = vmatprep.mubr.bf16.mxu0 0
        %1600 = vmatmul.mubr.bf16.gmra.mxu0 %v1565
        %v1601 = vpop.f32.mrf.mxu0
        %v1602 = vadd.f32 %v1562, %v1601
        %v1603 = vpop.f32.mrf.mxu0
        %v1604 = vpop.f32.mrf.mxu0
        %v1605 = vpop.f32.mrf.mxu0
        %1606 = vdwg.mxu0
        %v1607 = vadd.f32 %v1602, %v1259
        %s1608 = scalar_lea.vmem %s14, 1
        %v1609 = vld [vmem:[%s1608] sm:$0x1]
        %s1610 = scalar_lea.vmem %s15, 1
        %v1611 = vld [vmem:[%s1610] sm:$0x1]
        %v1612 = vsel %vm689, %v1607, 0.0
        %1613 = vadd.xlane.f32.xlu0 %v1612
        %v1614 = vpop.xlane.xlu0 %1613
        %v1615 = vmul.f32 %v1614, %v693
        %v1616 = vsub.f32 %v1607, %v1615
        %v1617 = vmul.f32 %v1616, %v1616
        %v1618 = vsel %vm689, %v1617, 0.0
        %1619 = vadd.xlane.f32.xlu0 %v1618
        %v1620 = vpop.xlane.xlu0 %1619
        %v1621 = vmul.f32 %v1620, %v693
        %v1622 = vadd.f32 %v1621, 1e-12
        %v1623 = vrsqrt.pop %v1622
        %v1624 = vmul.f32 %v1616, %v1623
        %v1626 = vlaneseq
        %v1627 = vshrl.u32 %v1626, 7
        %v1628 = vsub.s32 0, %v1627
        %v1629 = vrot.slane %v1609, %v1628
        %v1631 = vmul.f32 %v1624, %v1629
        %v1633 = vlaneseq
        %v1634 = vshrl.u32 %v1633, 7
        %v1635 = vsub.s32 0, %v1634
        %v1636 = vrot.slane %v1611, %v1635
        %v1638 = vadd.f32 %v1631, %v1636
        %v1639 = vpack.c.bf16 %v1638, %v1638
        %s1640 = scalar_lea.vmem %s10, 32
        %v1641 = vld [vmem:[%s1640] sm:$0xff]
        %v1642 = vld [vmem:[%s1640 + $0x8] sm:$0xff]
        %v1643 = vld [vmem:[%s1640 + $0x10] sm:$0xff]
        %v1644 = vld [vmem:[%s1640 + $0x18] sm:$0xff]
        %v1645 = vpack.c.bf16 %v1642, %v1641
        %v1646 = vpack.c.bf16 %v1644, %v1643
        %s1647 = scalar_lea.vmem %s11, 1
        %v1648 = vld [vmem:[%s1647] sm:$0x1]
        %v1650 = vlaneseq
        %v1651 = vshrl.u32 %v1650, 7
        %v1652 = vsub.s32 0, %v1651
        %v1653 = vrot.slane %v1648, %v1652
        %v1656 = vsel %vm689, %v1639, 0
        %1658 = vmatprep.subr.bf16.mxu0 0
        %1659 = vmatpush1.bf16.msra.mxu0 0
        %1660 = vmatprep.subr.bf16.mxu0 0
        %1661 = vmatpush1.bf16.msra.mxu0 0
        %1662 = vmatprep.subr.bf16.mxu0 0
        %1663 = vmatpush1.bf16.msra.mxu0 0
        %1664 = vmatprep.subr.bf16.mxu0 0
        %1665 = vmatpush1.bf16.msra.mxu0 0
        %1666 = vmatprep.subr.bf16.mxu0 0
        %1667 = vmatpush1.bf16.msra.mxu0 0
        %1668 = vmatprep.subr.bf16.mxu0 0
        %1669 = vmatpush1.bf16.msra.mxu0 0
        %1670 = vmatprep.subr.bf16.mxu0 0
        %1671 = vmatpush1.bf16.msra.mxu0 %v1646
        %1672 = vmatprep.subr.bf16.mxu0 0
        %1673 = vmatpush1.bf16.msra.mxu0 %v1645
        %1674 = vmatprep.subr.bf16.mxu0 0
        %1675 = vmatpush2.bf16.msra.mxu0 0
        %1676 = vmatprep.subr.bf16.mxu0 0
        %1677 = vmatpush2.bf16.msra.mxu0 0
        %1678 = vmatprep.subr.bf16.mxu0 0
        %1679 = vmatpush2.bf16.msra.mxu0 0
        %1680 = vmatprep.subr.bf16.mxu0 0
        %1681 = vmatpush2.bf16.msra.mxu0 0
        %1682 = vmatprep.subr.bf16.mxu0 0
        %1683 = vmatpush2.bf16.msra.mxu0 0
        %1684 = vmatprep.subr.bf16.mxu0 0
        %1685 = vmatpush2.bf16.msra.mxu0 0
        %1686 = vmatprep.subr.bf16.mxu0 0
        %1687 = vmatpush2.bf16.msra.mxu0 0
        %1688 = vmatprep.subr.bf16.mxu0 0
        %1689 = vmatpush2.bf16.msra.mxu0 0
        %1690 = vmatprep.mubr.bf16.mxu0 0
        %1691 = vmatmul.mubr.bf16.gmra.mxu0 %v1656
        %v1692 = vpop.f32.mrf.mxu0
        %v1693 = vadd.f32 %v1653, %v1692
        %v1694 = vpop.f32.mrf.mxu0
        %v1695 = vpop.f32.mrf.mxu0
        %v1696 = vpop.f32.mrf.mxu0
        %1697 = vdwg.mxu0
        %v1698 = vmul.f32 %v1693, %v1693
        %v1699 = vmul.f32 %v1693, %v1698
        %v1700 = vmul.f32 %v1699, 0.044715
        %v1701 = vadd.f32 %v1693, %v1700
        %v1702 = vmul.f32 %v1701, 0.7978846
        %v1703 = vtanh.pop %v1702
        %v1704 = vadd.f32 %v1703, 1.0
        %v1705 = vmul.f32 %v1704, 0.5
        %v1706 = vmul.f32 %v1693, %v1705
        %v1707 = vpack.c.bf16 %v1706, %v1706
        %s1708 = scalar_lea.vmem %s12, 64
        %v1709 = vld [vmem:[%s1708] sm:$0xff]
        %v1710 = vld [vmem:[%s1708 + $0x8] sm:$0xff]
        %v1711 = vld [vmem:[%s1708 + $0x10] sm:$0xff]
        %v1712 = vld [vmem:[%s1708 + $0x18] sm:$0xff]
        %v1713 = vld [vmem:[%s1708 + $0x20] sm:$0xff]
        %v1714 = vld [vmem:[%s1708 + $0x28] sm:$0xff]
        %v1715 = vld [vmem:[%s1708 + $0x30] sm:$0xff]
        %v1716 = vld [vmem:[%s1708 + $0x38] sm:$0xff]
        %v1717 = vpack.c.bf16 %v1710, %v1709
        %v1718 = vpack.c.bf16 %v1712, %v1711
        %v1719 = vpack.c.bf16 %v1714, %v1713
        %v1720 = vpack.c.bf16 %v1716, %v1715
        %s1721 = scalar_lea.vmem %s13, 1
        %v1722 = vld [vmem:[%s1721] sm:$0x1]
        %v1724 = vlaneseq
        %v1725 = vshrl.u32 %v1724, 7
        %v1726 = vsub.s32 0, %v1725
        %v1727 = vrot.slane %v1722, %v1726
        %v1730 = vsel %vm1186, %v1707, 0
        %1732 = vmatprep.subr.bf16.mxu0 0
        %1733 = vmatpush1.bf16.msra.mxu0 0
        %1734 = vmatprep.subr.bf16.mxu0 0
        %1735 = vmatpush1.bf16.msra.mxu0 0
        %1736 = vmatprep.subr.bf16.mxu0 0
        %1737 = vmatpush1.bf16.msra.mxu0 0
        %1738 = vmatprep.subr.bf16.mxu0 0
        %1739 = vmatpush1.bf16.msra.mxu0 0
        %1740 = vmatprep.subr.bf16.mxu0 0
        %1741 = vmatpush1.bf16.msra.mxu0 %v1720
        %1742 = vmatprep.subr.bf16.mxu0 0
        %1743 = vmatpush1.bf16.msra.mxu0 %v1719
        %1744 = vmatprep.subr.bf16.mxu0 0
        %1745 = vmatpush1.bf16.msra.mxu0 %v1718
        %1746 = vmatprep.subr.bf16.mxu0 0
        %1747 = vmatpush1.bf16.msra.mxu0 %v1717
        %1748 = vmatprep.subr.bf16.mxu0 0
        %1749 = vmatpush2.bf16.msra.mxu0 0
        %1750 = vmatprep.subr.bf16.mxu0 0
        %1751 = vmatpush2.bf16.msra.mxu0 0
        %1752 = vmatprep.subr.bf16.mxu0 0
        %1753 = vmatpush2.bf16.msra.mxu0 0
        %1754 = vmatprep.subr.bf16.mxu0 0
        %1755 = vmatpush2.bf16.msra.mxu0 0
        %1756 = vmatprep.subr.bf16.mxu0 0
        %1757 = vmatpush2.bf16.msra.mxu0 0
        %1758 = vmatprep.subr.bf16.mxu0 0
        %1759 = vmatpush2.bf16.msra.mxu0 0
        %1760 = vmatprep.subr.bf16.mxu0 0
        %1761 = vmatpush2.bf16.msra.mxu0 0
        %1762 = vmatprep.subr.bf16.mxu0 0
        %1763 = vmatpush2.bf16.msra.mxu0 0
        %1764 = vmatprep.mubr.bf16.mxu0 0
        %1765 = vmatmul.mubr.bf16.gmra.mxu0 %v1730
        %v1766 = vpop.f32.mrf.mxu0
        %v1767 = vadd.f32 %v1727, %v1766
        %v1768 = vpop.f32.mrf.mxu0
        %v1769 = vpop.f32.mrf.mxu0
        %v1770 = vpop.f32.mrf.mxu0
        %1771 = vdwg.mxu0
        %v1772 = vadd.f32 %v1767, %v1638
        %s1773 = scalar_lea.vmem %s16, 1
        %v1774 = vld [vmem:[%s1773] sm:$0x1]
        %s1775 = scalar_lea.vmem %s17, 1
        %v1776 = vld [vmem:[%s1775] sm:$0x1]
        %v1777 = vsel %vm689, %v1772, 0.0
        %1778 = vadd.xlane.f32.xlu0 %v1777
        %v1779 = vpop.xlane.xlu0 %1778
        %v1780 = vmul.f32 %v1779, %v693
        %v1781 = vsub.f32 %v1772, %v1780
        %v1782 = vmul.f32 %v1781, %v1781
        %v1783 = vsel %vm689, %v1782, 0.0
        %1784 = vadd.xlane.f32.xlu0 %v1783
        %v1785 = vpop.xlane.xlu0 %1784
        %v1786 = vmul.f32 %v1785, %v693
        %v1787 = vadd.f32 %v1786, 1e-12
        %v1788 = vrsqrt.pop %v1787
        %v1789 = vmul.f32 %v1781, %v1788
        %v1791 = vlaneseq
        %v1792 = vshrl.u32 %v1791, 7
        %v1793 = vsub.s32 0, %v1792
        %v1794 = vrot.slane %v1774, %v1793
        %v1796 = vmul.f32 %v1789, %v1794
        %v1798 = vlaneseq
        %v1799 = vshrl.u32 %v1798, 7
        %v1800 = vsub.s32 0, %v1799
        %v1801 = vrot.slane %v1776, %v1800
        %v1803 = vadd.f32 %v1796, %v1801
        %1804 = vst.msk [vmem:[%s577] sm:$0xff] %vm689, %v1803
        %s1805 = sand.u32 %s428, 1
        %s1806 = scalar_lea.sflag [#allocation3], %s1805
        %s1807 = sand.u32 %s428, 1
        %s1808 = smul.addr %s1807, 8
        %s1809 = scalar_lea.vmem [#allocation2], %s1808
        // Predicated region
        $region93: #{tpu_custom_call.1} parent=91 // pred_check
          %p1810 = pneg %p438
        $region94: #{tpu_custom_call.1} parent=91 // pred_check_branch
          %1812 = sbr.rel (%p1810) target = $region96
        $region95: #{tpu_custom_call.1} parent=91 // pred_region
          %s1814 = ssub.s32 128, 128
          %1815 = vsyncadd %s1806, %s1814
          %s1816 = smul.addr %s32, 128
          %s1817 = scalar_lea.hbm %s18, %s1816
          %s1819 = sshll.u32 %s1809, 4
          %s1820 = int_to_ptr.vmem [resolvable:$true] %s1819
          %1822 = dma.vmem_to_hbm [thread:$0]  %s1820, 128, %s1817, %s1806
        $region96: #{tpu_custom_call.1} parent=91 // pred_fallthru
          _
      $region92: #{tpu_custom_call.1} parent=5 // pred_fallthru
        _
      %p1823 = scmp.le.s32.totalorder 2, %s27
      // Predicated region
      $region97: #{tpu_custom_call.1} parent=5 // pred_check
        %p1824 = pneg %p1823
      $region98: #{tpu_custom_call.1} parent=5 // pred_check_branch
        %1826 = sbr.rel (%p1824) target = $region100
      $region99: #{tpu_custom_call.1} parent=5 // pred_region
        %s1827 = ssub.s32 %s27, 2
        // Predicated region
        $region101: #{tpu_custom_call.1} parent=99 // pred_check
          %p1828 = pneg %p444
        $region102: #{tpu_custom_call.1} parent=99 // pred_check_branch
          %1830 = sbr.rel (%p1828) target = $region104
        $region103: #{tpu_custom_call.1} parent=99 // pred_region
          %s1831 = sand.u32 %s429, 1
          %s1832 = scalar_lea.sflag [#allocation3], %s1831
          %s1833 = sand.u32 %s429, 1
          %s1834 = smul.addr %s1833, 8
          %s1835 = scalar_lea.vmem [#allocation2], %s1834
          %1836 = dma.done %s1832, 128
        $region104: #{tpu_custom_call.1} parent=99 // pred_fallthru
          _
      $region100: #{tpu_custom_call.1} parent=5 // pred_fallthru
        _
    $region6: #{tpu_custom_call.1} parent=1 // loop_footer
      %s31 = sadd.s32 1, %s27
    $region7: #{tpu_custom_call.1} parent=1 // loop_footer_branch
      %26 = sbr.rel target = $region3
    $region8: #{tpu_custom_call.1} parent=1 // loop_exit
      _
    %1837 = vsyncpa [#allocation3], 1
    %s1838 = scalar_lea.sflag [#allocation3], 1
    %1839 = vsyncpa %s1838, 1

</llo_original>
